<compile_context>
chip_gen: v7x
topology: tpu7x:2x2x1
jax: 0.10.0
libtpu: 0.0.40
codegen_flags: <defaults>
</compile_context>

<pallas_src>
import jax
import jax.numpy as jnp
from jax.experimental import pallas as pl
from jax.experimental.pallas import tpu as pltpu

N = 8                # nodes per graph (8-node bidirectional chain)
NEG_SLOPE = 0.2      # PyG default negative_slope for GAT / GATv2
NEG_INF = -1e30

H1, C1 = 4, 16       # GATConv(3, 16, heads=4)         -> [N, 64], then ReLU
H2, C2 = 2, 16       # GATv2Conv(64, 16, heads=2)      -> [N, 32]
H3, C3 = 1, 7        # TransformerConv(32, 7, heads=1) -> [N, 7]

# ----------------------------------------------------------------------------
# packed-parameter layout: ONE [72, 128] f32 buffer (36 KB), entries co-located
# name -> (row, col, shape)
# ----------------------------------------------------------------------------
_PACK_ROWS, _PACK_W = 72, 128
_SLOTS = {
    "w2":      (0,  0,   (H1 * C1, 2 * H2 * C2)),   # [64, 64] lin_l | lin_r
    "w3":      (0,  64,  (H2 * C2, 32)),            # [32, 32] wq|wk|wv|wskip (8-padded)
    "att2_bd": (0,  96,  (H2 * C2, H2)),            # [32, 2]  block-diag att2
    "bias_sl": (0,  120, (N * N, 1)),               # [64, 1]  adj+self-loop additive mask
    "bias_ns": (32, 64,  (N, N)),                   # [8, 8]   adj (no self loops) mask
    "w1_ext":  (64, 0,   (3, H1 * C1 + 2 * H1)),    # [3, 72]  w1 | w1@A_dst | w1@A_src
    "b1":      (68, 0,   (1, H1 * C1)),             # [1, 64]
    "b_lr":    (69, 0,   (1, 2 * H2 * C2)),         # [1, 64]
    "b2":      (70, 0,   (1, H2 * C2)),             # [1, 32]
    "b3":      (70, 32,  (1, 32)),                  # [1, 32]
}


def _take(p_ref, name):
    r, c, (nr, nc) = _SLOTS[name]
    return p_ref[r:r + nr, c:c + nc]


def _leaky(v):
    return jnp.where(v > 0, v, NEG_SLOPE * v)


# ----------------------------------------------------------------------------
# Pallas kernel (one graph per grid step)
# ----------------------------------------------------------------------------
def attention_gnn_kernel(x_ref, p_ref, out_ref):
    f32 = jnp.float32
    dotf = lambda a, b: jnp.dot(a, b, preferred_element_type=f32)
    g = lambda name: _take(p_ref, name)

    x = x_ref[...]                                              # [8, 3]

    # constant 0/1 gather matrices, generated in-kernel (exact, no DMA).
    # flat index f = i*8 + j  (i = destination, j = source); N = 8 -> shift/and.
    r64 = jax.lax.broadcasted_iota(jnp.int32, (N * N, N), 0)
    c64 = jax.lax.broadcasted_iota(jnp.int32, (N * N, N), 1)
    rep = ((r64 >> 3) == c64).astype(f32)                       # [64, 8] f -> dst i
    til = ((r64 & 7) == c64).astype(f32)                        # [64, 8] f -> src j
    rT = jax.lax.broadcasted_iota(jnp.int32, (N, N * N), 0)
    cT = jax.lax.broadcasted_iota(jnp.int32, (N, N * N), 1)
    rept = ((cT >> 3) == rT).astype(f32)                        # [8, 64] per-dst group sum
    hr1 = jax.lax.broadcasted_iota(jnp.int32, (H1, H1 * C1), 0)
    hc1 = jax.lax.broadcasted_iota(jnp.int32, (H1, H1 * C1), 1)
    cmask1 = ((hc1 >> 4) == hr1).astype(f32)                    # [4, 64] head -> col block
    hr2 = jax.lax.broadcasted_iota(jnp.int32, (H2, H2 * C2), 0)
    hc2 = jax.lax.broadcasted_iota(jnp.int32, (H2, H2 * C2), 1)
    cmask2 = ((hc2 >> 4) == hr2).astype(f32)                    # [2, 32]

    bias_fl = g("bias_sl")                                      # [64, 1] additive mask
    bias_ns = g("bias_ns")                                      # [8, 8]

    # ---- Layer 1: GATConv(3, 16, heads=4), concat, self-loops, then ReLU ----
    proj1 = dotf(x, g("w1_ext"))                                # [8, 72] = h1|ed|es
    h1 = proj1[:, 0:H1 * C1]                                    # [8, 64]
    ed = proj1[:, H1 * C1:H1 * C1 + H1]                         # [8, 4] dst scores
    es = proj1[:, H1 * C1 + H1:H1 * C1 + 2 * H1]                # [8, 4] src scores
    e1 = _leaky(dotf(rep, ed) + dotf(til, es))                  # [64, 4]
    p1 = jnp.exp(e1 + bias_fl)                                  # masked -> exactly 0
    til_h1 = dotf(til, h1)                                      # [64, 64] source features
    num1 = dotf(rept, dotf(p1, cmask1) * til_h1)                # [8, 64] unnormalized agg
    inv1 = pl.reciprocal(dotf(rept, p1), approx=True)           # [8, 4]  (overlaps num path)
    x1 = jnp.maximum(num1 * dotf(inv1, cmask1) + g("b1"), 0.0)  # [8, 64]

    # ---- Layer 2: GATv2Conv(64, 16, heads=2), concat, self-loops ----
    hlr = dotf(x1, g("w2")) + g("b_lr")                         # [8, 64] = hl | hr
    hl = hlr[:, 0:H2 * C2]                                      # [8, 32] source
    hr = hlr[:, H2 * C2:2 * H2 * C2]                            # [8, 32] target
    til_hl = dotf(til, hl)                                      # [64, 32]
    s = _leaky(dotf(rep, hr) + til_hl)                          # [64, 32]
    e2 = dotf(s, g("att2_bd"))                                  # [64, 2]
    p2 = jnp.exp(e2 + bias_fl)
    num2 = dotf(rept, dotf(p2, cmask2) * til_hl)                # [8, 32]
    inv2 = pl.reciprocal(dotf(rept, p2), approx=True)           # [8, 2]
    x2 = num2 * dotf(inv2, cmask2) + g("b2")                    # [8, 32]

    # ---- Layer 3: TransformerConv(32, 7, heads=1), root_weight, no self-loops
    qkvs = dotf(x2, g("w3")) + g("b3")                          # [8, 32] q|k|v|skip (8-pad)
    q = qkvs[:, 0:8]
    k = qkvs[:, 8:16]
    v = qkvs[:, 16:24]
    sk = qkvs[:, 24:32]
    e3 = jax.lax.dot_general(q, k, (((1,), (1,)), ((), ())),
                             preferred_element_type=f32) * (C3 ** -0.5)   # [8, 8]
    p3 = jnp.exp(e3 + bias_ns)
    inv3 = pl.reciprocal(jnp.sum(p3, axis=1, keepdims=True), approx=True)
    out_ref[...] = dotf(p3, v) * inv3 + sk                      # [8, 8] (col 7 is pad)


@jax.jit
def attention_gnn(xb, packed_params):
    """xb: [B, 8, 3] batch of graphs (same chain adjacency) -> [B, 8, 7]."""
    B = xb.shape[0]
    out = pl.pallas_call(
        attention_gnn_kernel,
        out_shape=jax.ShapeDtypeStruct((B, N, 8), jnp.float32),
        grid=(B,),
        in_specs=[
            pl.BlockSpec((None, N, 3), lambda b: (b, 0, 0)),
            pl.BlockSpec((_PACK_ROWS, _PACK_W), lambda b: (0, 0)),  # grid-invariant
        ],
        out_specs=pl.BlockSpec((None, N, 8), lambda b: (b, 0, 0)),
        compiler_params=pltpu.CompilerParams(
            dimension_semantics=("parallel",)),       # shards batch over TCs on v7x
    )(xb, packed_params)
    return out[:, :, :H3 * C3]                        # drop the zero pad column


# ----------------------------------------------------------------------------
# host-side parameter packing
# ----------------------------------------------------------------------------
def pack_params(params, adj_sl, adj_ns):
    (w1, att_src, att_dst, b1, wl, bl, wr, br, att2, b2,
     wq, bq, wk, bk, wv, bv, wskip, bskip) = params

    # fold the per-head attention score vectors into block-diag projectors so
    # the layer-1 dot emits h1 | e_dst | e_src in a single MXU pass
    a_src_bd = jnp.zeros((H1 * C1, H1), jnp.float32)
    a_dst_bd = jnp.zeros((H1 * C1, H1), jnp.float32)
    for h in range(H1):
        a_src_bd = a_src_bd.at[h * C1:(h + 1) * C1, h].set(att_src[h])
        a_dst_bd = a_dst_bd.at[h * C1:(h + 1) * C1, h].set(att_dst[h])
    w1_ext = jnp.concatenate([w1, w1 @ a_dst_bd, w1 @ a_src_bd], axis=1)   # [3, 72]

    att2_bd = jnp.zeros((H2 * C2, H2), jnp.float32)
    for h in range(H2):
        att2_bd = att2_bd.at[h * C2:(h + 1) * C2, h].set(att2[h])

    w2 = jnp.concatenate([wl, wr], axis=1)                 # [64, 64]
    b_lr = jnp.concatenate([bl, br], axis=1)               # [1, 64]

    pad_w = lambda w: jnp.pad(w, ((0, 0), (0, 1)))         # [32,7] -> [32,8]
    pad_b = lambda b: jnp.pad(b, ((0, 0), (0, 1)))         # [1,7]  -> [1,8]
    w3 = jnp.concatenate([pad_w(wq), pad_w(wk), pad_w(wv), pad_w(wskip)], axis=1)
    b3 = jnp.concatenate([pad_b(bq), pad_b(bk), pad_b(bv), pad_b(bskip)], axis=1)

    # additive softmax masks; every destination must keep >= 1 admissible source
    # (otherwise the approx reciprocal would hit a zero denominator)
    assert bool(jnp.all(jnp.sum(adj_sl, axis=1) > 0)), "isolated node in GAT layers"
    assert bool(jnp.all(jnp.sum(adj_ns, axis=1) > 0)), "isolated node in Transformer layer"
    bias_sl = jnp.where(adj_sl > 0, 0.0, NEG_INF).reshape(N * N, 1)
    bias_ns = jnp.where(adj_ns > 0, 0.0, NEG_INF)

    entries = {
        "w1_ext": w1_ext, "b1": b1, "w2": w2, "b_lr": b_lr, "att2_bd": att2_bd,
        "b2": b2, "w3": w3, "b3": b3, "bias_sl": bias_sl, "bias_ns": bias_ns,
    }
    buf = jnp.zeros((_PACK_ROWS, _PACK_W), jnp.float32)
    occupied = set()
    for name, val in entries.items():
        r, c, (nr, nc) = _SLOTS[name]
        assert val.shape == (nr, nc), (name, val.shape, (nr, nc))
        cells = {(r + i, c + j) for i in range(nr) for j in range(nc)}
        assert not (cells & occupied), f"packed-slot overlap at {name}"
        occupied |= cells
        buf = buf.at[r:r + nr, c:c + nc].set(val.astype(jnp.float32))
    return buf


# ----------------------------------------------------------------------------
# pure-JAX reference (original, unfused math) for the sanity check
# ----------------------------------------------------------------------------
def _masked_softmax_ref(e, adj):
    e = jnp.where(adj > 0, e, NEG_INF)
    m = jnp.max(e, axis=1, keepdims=True)
    p = jnp.where(adj > 0, jnp.exp(e - m), 0.0)
    return p / jnp.sum(p, axis=1, keepdims=True)


def _dot_t(a, b):
    return jax.lax.dot_general(a, b, (((1,), (1,)), ((), ())),
                               preferred_element_type=jnp.float32)


def _forward_reference(x, adj_sl, adj_ns,
                       w1, att_src, att_dst, b1,
                       wl, bl, wr, br, att2, b2,
                       wq, bq, wk, bk, wv, bv, wskip, bskip):
    # Layer 1: GATConv
    h1 = jnp.dot(x, w1, preferred_element_type=jnp.float32)
    heads = []
    for h in range(H1):
        xh = h1[:, h * C1:(h + 1) * C1]
        e_src = _dot_t(att_src[h:h + 1, :], xh)            # [1, N]
        e_dst = _dot_t(xh, att_dst[h:h + 1, :])            # [N, 1]
        alpha = _masked_softmax_ref(_leaky(e_dst + e_src), adj_sl)
        heads.append(jnp.dot(alpha, xh, preferred_element_type=jnp.float32))
    x1 = jnp.maximum(jnp.concatenate(heads, axis=-1) + b1, 0.0)

    # Layer 2: GATv2Conv
    hl = jnp.dot(x1, wl, preferred_element_type=jnp.float32) + bl
    hr = jnp.dot(x1, wr, preferred_element_type=jnp.float32) + br
    heads = []
    for h in range(H2):
        hl_h = hl[:, h * C2:(h + 1) * C2]
        hr_h = hr[:, h * C2:(h + 1) * C2]
        s = _leaky(hr_h[:, None, :] + hl_h[None, :, :])
        e = jnp.sum(s * att2[h:h + 1, :][None], axis=-1)
        alpha = _masked_softmax_ref(e, adj_sl)
        heads.append(jnp.dot(alpha, hl_h, preferred_element_type=jnp.float32))
    x2 = jnp.concatenate(heads, axis=-1) + b2

    # Layer 3: TransformerConv
    q = jnp.dot(x2, wq, preferred_element_type=jnp.float32) + bq
    k = jnp.dot(x2, wk, preferred_element_type=jnp.float32) + bk
    v = jnp.dot(x2, wv, preferred_element_type=jnp.float32) + bv
    alpha = _masked_softmax_ref(_dot_t(q, k) * (C3 ** -0.5), adj_ns)
    out = jnp.dot(alpha, v, preferred_element_type=jnp.float32)
    return out + jnp.dot(x2, wskip, preferred_element_type=jnp.float32) + bskip


def init_params(key):
    def nrm(k, shape, scale):
        return scale * jax.random.normal(k, shape, dtype=jnp.float32)

    ks = jax.random.split(key, 18)
    return (
        nrm(ks[0],  (3, H1 * C1), 0.40),          # w1       (GATConv lin, no bias)
        nrm(ks[1],  (H1, C1),     0.30),          # att_src
        nrm(ks[2],  (H1, C1),     0.30),          # att_dst
        nrm(ks[3],  (1, H1 * C1), 0.05),          # b1
        nrm(ks[4],  (H1 * C1, H2 * C2), 0.15),    # wl   (GATv2 lin_l)
        nrm(ks[5],  (1, H2 * C2), 0.05),          # bl
        nrm(ks[6],  (H1 * C1, H2 * C2), 0.15),    # wr   (GATv2 lin_r)
        nrm(ks[7],  (1, H2 * C2), 0.05),          # br
        nrm(ks[8],  (H2, C2),     0.30),          # att2
        nrm(ks[9],  (1, H2 * C2), 0.05),          # b2
        nrm(ks[10], (H2 * C2, H3 * C3), 0.20),    # wq
        nrm(ks[11], (1, H3 * C3), 0.05),          # bq
        nrm(ks[12], (H2 * C2, H3 * C3), 0.20),    # wk
        nrm(ks[13], (1, H3 * C3), 0.05),          # bk
        nrm(ks[14], (H2 * C2, H3 * C3), 0.20),    # wv
        nrm(ks[15], (1, H3 * C3), 0.05),          # bv
        nrm(ks[16], (H2 * C2, H3 * C3), 0.20),    # wskip
        nrm(ks[17], (1, H3 * C3), 0.05),          # bskip
    )


if __name__ == "__main__":
    root = jax.random.PRNGKey(0)
    kx, kp = jax.random.split(root)

    # graph from the test: an 8-node bidirectional chain
    src = jnp.array([0, 1, 1, 2, 2, 3, 3, 4, 4, 5, 5, 6, 6, 7], dtype=jnp.int32)
    dst = jnp.array([1, 0, 2, 1, 3, 2, 4, 3, 5, 4, 6, 5, 7, 6], dtype=jnp.int32)
    adj_ns = jnp.zeros((N, N), jnp.float32).at[dst, src].set(1.0)   # [dst, src]
    adj_sl = jnp.maximum(adj_ns, jnp.eye(N, dtype=jnp.float32))     # + self loops

    x = jax.random.normal(kx, (N, 3), dtype=jnp.float32)            # the module's input
    params = init_params(kp)
    packed = pack_params(params, adj_sl, adj_ns)

    # --- single graph: exactly the PyTorch module's forward ---
    out1 = jax.block_until_ready(attention_gnn(x[None], packed))[0]
    ref = _forward_reference(x, adj_sl, adj_ns, *params)
    assert out1.shape == (N, H3 * C3)
    assert jnp.allclose(out1, ref, atol=5e-3, rtol=5e-3), \
        float(jnp.max(jnp.abs(out1 - ref)))

    # --- batched path: grid over graphs ("parallel" -> both TCs on v7x) ---
    B = 4
    xb = jnp.concatenate(
        [x[None], jax.random.normal(jax.random.PRNGKey(1), (B - 1, N, 3), jnp.float32)])
    outb = jax.block_until_ready(attention_gnn(xb, packed))
    assert outb.shape == (B, N, H3 * C3)
    for b in (0, B - 1):
        refb = _forward_reference(xb[b], adj_sl, adj_ns, *params)
        assert jnp.allclose(outb[b], refb, atol=5e-3, rtol=5e-3), \
            (b, float(jnp.max(jnp.abs(outb[b] - refb))))

    print("KERNEL_OK")
</pallas_src>

<mosaic_0001>
module attributes {stable_mosaic.version = 11 : i64} {
  func.func @attention_gnn_kernel(%arg0: i32, %arg1: memref<1x8x3xf32, #tpu.memory_space<vmem>>, %arg2: memref<72x128xf32, #tpu.memory_space<vmem>>, %arg3: memref<1x8x8xf32, #tpu.memory_space<vmem>>) attributes {dimension_semantics = [#tpu.dimension_semantics<parallel>], iteration_bounds = array<i64: 1>, scalar_prefetch = 0 : i64, scratch_operands = 0 : i64, tpu.core_type = #tpu.core_type<tc>, window_params = [{transform_indices = @transform_0, window_bounds = array<i64: 1, 8, 3>}, {pipeline_mode = #tpu.pipeline_mode<synchronous>, transform_indices = @transform_1, window_bounds = array<i64: 72, 128>}, {transform_indices = @transform_2, window_bounds = array<i64: 1, 8, 8>}]} {
    %c0 = arith.constant 0 : index
    %c0_0 = arith.constant 0 : index
    %c0_1 = arith.constant 0 : index
    %0 = vector.load %arg1[%c0, %c0_0, %c0_1] : memref<1x8x3xf32, #tpu.memory_space<vmem>>, vector<1x8x3xf32>
    %1 = vector.shape_cast %0 : vector<1x8x3xf32> to vector<8x3xf32>
    %2 = tpu.iota {dimensions = array<i32: 0>} : vector<64x8xi32>
    %3 = tpu.iota {dimensions = array<i32: 1>} : vector<64x8xi32>
    %c3_i32 = arith.constant 3 : i32
    %4 = vector.broadcast %c3_i32 : i32 to vector<64x8xi32>
    %5 = arith.shrsi %2, %4 : vector<64x8xi32>
    %6 = arith.cmpi eq, %5, %3 : vector<64x8xi32>
    %7 = arith.extui %6 : vector<64x8xi1> to vector<64x8xi32>
    %8 = arith.sitofp %7 : vector<64x8xi32> to vector<64x8xf32>
    %c7_i32 = arith.constant 7 : i32
    %9 = vector.broadcast %c7_i32 : i32 to vector<64x8xi32>
    %10 = arith.andi %2, %9 : vector<64x8xi32>
    %11 = arith.cmpi eq, %10, %3 : vector<64x8xi32>
    %12 = arith.extui %11 : vector<64x8xi1> to vector<64x8xi32>
    %13 = arith.sitofp %12 : vector<64x8xi32> to vector<64x8xf32>
    %14 = tpu.iota {dimensions = array<i32: 0>} : vector<8x64xi32>
    %15 = tpu.iota {dimensions = array<i32: 1>} : vector<8x64xi32>
    %c3_i32_2 = arith.constant 3 : i32
    %16 = vector.broadcast %c3_i32_2 : i32 to vector<8x64xi32>
    %17 = arith.shrsi %15, %16 : vector<8x64xi32>
    %18 = arith.cmpi eq, %17, %14 : vector<8x64xi32>
    %19 = arith.extui %18 : vector<8x64xi1> to vector<8x64xi32>
    %20 = arith.sitofp %19 : vector<8x64xi32> to vector<8x64xf32>
    %21 = tpu.iota {dimensions = array<i32: 0>} : vector<4x64xi32>
    %22 = tpu.iota {dimensions = array<i32: 1>} : vector<4x64xi32>
    %c4_i32 = arith.constant 4 : i32
    %23 = vector.broadcast %c4_i32 : i32 to vector<4x64xi32>
    %24 = arith.shrsi %22, %23 : vector<4x64xi32>
    %25 = arith.cmpi eq, %24, %21 : vector<4x64xi32>
    %26 = arith.extui %25 : vector<4x64xi1> to vector<4x64xi32>
    %27 = arith.sitofp %26 : vector<4x64xi32> to vector<4x64xf32>
    %28 = tpu.iota {dimensions = array<i32: 0>} : vector<2x32xi32>
    %29 = tpu.iota {dimensions = array<i32: 1>} : vector<2x32xi32>
    %c4_i32_3 = arith.constant 4 : i32
    %30 = vector.broadcast %c4_i32_3 : i32 to vector<2x32xi32>
    %31 = arith.shrsi %29, %30 : vector<2x32xi32>
    %32 = arith.cmpi eq, %31, %28 : vector<2x32xi32>
    %33 = arith.extui %32 : vector<2x32xi1> to vector<2x32xi32>
    %34 = arith.sitofp %33 : vector<2x32xi32> to vector<2x32xf32>
    %c0_4 = arith.constant 0 : index
    %c120 = arith.constant 120 : index
    %35 = vector.load %arg2[%c0_4, %c120] : memref<72x128xf32, #tpu.memory_space<vmem>>, vector<64x1xf32>
    %c32 = arith.constant 32 : index
    %c64 = arith.constant 64 : index
    %36 = vector.load %arg2[%c32, %c64] : memref<72x128xf32, #tpu.memory_space<vmem>>, vector<8x8xf32>
    %c64_5 = arith.constant 64 : index
    %c0_6 = arith.constant 0 : index
    %37 = vector.load %arg2[%c64_5, %c0_6] : memref<72x128xf32, #tpu.memory_space<vmem>>, vector<3x72xf32>
    %cst = arith.constant dense<0.000000e+00> : vector<8x72xf32>
    %38 = tpu.matmul %1, %37, %cst {dimension_numbers = #tpu.dot_dimension_numbers<[1], [0], [0], [1], [0, 0, 1, 1], [], []>} : vector<8x3xf32>, vector<3x72xf32>, vector<8x72xf32> -> vector<8x72xf32>
    %39 = vector.extract_strided_slice %38 {offsets = [0, 0], sizes = [8, 64], strides = [1, 1]} : vector<8x72xf32> to vector<8x64xf32>
    %40 = vector.extract_strided_slice %38 {offsets = [0, 64], sizes = [8, 4], strides = [1, 1]} : vector<8x72xf32> to vector<8x4xf32>
    %41 = vector.extract_strided_slice %38 {offsets = [0, 68], sizes = [8, 4], strides = [1, 1]} : vector<8x72xf32> to vector<8x4xf32>
    %cst_7 = arith.constant dense<0.000000e+00> : vector<64x4xf32>
    %42 = tpu.matmul %8, %40, %cst_7 {dimension_numbers = #tpu.dot_dimension_numbers<[1], [0], [0], [1], [0, 0, 1, 1], [], []>} : vector<64x8xf32>, vector<8x4xf32>, vector<64x4xf32> -> vector<64x4xf32>
    %cst_8 = arith.constant dense<0.000000e+00> : vector<64x4xf32>
    %43 = tpu.matmul %13, %41, %cst_8 {dimension_numbers = #tpu.dot_dimension_numbers<[1], [0], [0], [1], [0, 0, 1, 1], [], []>} : vector<64x8xf32>, vector<8x4xf32>, vector<64x4xf32> -> vector<64x4xf32>
    %44 = arith.addf %42, %43 : vector<64x4xf32>
    %cst_9 = arith.constant 0.000000e+00 : f32
    %45 = vector.broadcast %cst_9 : f32 to vector<64x4xf32>
    %46 = arith.cmpf ogt, %44, %45 : vector<64x4xf32>
    %cst_10 = arith.constant 2.000000e-01 : f32
    %47 = vector.broadcast %cst_10 : f32 to vector<64x4xf32>
    %48 = arith.mulf %47, %44 : vector<64x4xf32>
    %49 = arith.select %46, %44, %48 : vector<64x4xi1>, vector<64x4xf32>
    %50 = vector.broadcast %35 : vector<64x1xf32> to vector<64x4xf32>
    %51 = arith.addf %49, %50 : vector<64x4xf32>
    %52 = math.exp %51 : vector<64x4xf32>
    %cst_11 = arith.constant dense<0.000000e+00> : vector<64x64xf32>
    %53 = tpu.matmul %13, %39, %cst_11 {dimension_numbers = #tpu.dot_dimension_numbers<[1], [0], [0], [1], [0, 0, 1, 1], [], []>} : vector<64x8xf32>, vector<8x64xf32>, vector<64x64xf32> -> vector<64x64xf32>
    %cst_12 = arith.constant dense<0.000000e+00> : vector<64x64xf32>
    %54 = tpu.matmul %52, %27, %cst_12 {dimension_numbers = #tpu.dot_dimension_numbers<[1], [0], [0], [1], [0, 0, 1, 1], [], []>} : vector<64x4xf32>, vector<4x64xf32>, vector<64x64xf32> -> vector<64x64xf32>
    %55 = arith.mulf %54, %53 : vector<64x64xf32>
    %cst_13 = arith.constant dense<0.000000e+00> : vector<8x64xf32>
    %56 = tpu.matmul %20, %55, %cst_13 {dimension_numbers = #tpu.dot_dimension_numbers<[1], [0], [0], [1], [0, 0, 1, 1], [], []>} : vector<8x64xf32>, vector<64x64xf32>, vector<8x64xf32> -> vector<8x64xf32>
    %cst_14 = arith.constant dense<0.000000e+00> : vector<8x4xf32>
    %57 = tpu.matmul %20, %52, %cst_14 {dimension_numbers = #tpu.dot_dimension_numbers<[1], [0], [0], [1], [0, 0, 1, 1], [], []>} : vector<8x64xf32>, vector<64x4xf32>, vector<8x4xf32> -> vector<8x4xf32>
    %58 = tpu.reciprocal %57 {approx = true} : vector<8x4xf32> -> vector<8x4xf32>
    %cst_15 = arith.constant dense<0.000000e+00> : vector<8x64xf32>
    %59 = tpu.matmul %58, %27, %cst_15 {dimension_numbers = #tpu.dot_dimension_numbers<[1], [0], [0], [1], [0, 0, 1, 1], [], []>} : vector<8x4xf32>, vector<4x64xf32>, vector<8x64xf32> -> vector<8x64xf32>
    %60 = arith.mulf %56, %59 : vector<8x64xf32>
    %c68 = arith.constant 68 : index
    %c0_16 = arith.constant 0 : index
    %61 = vector.load %arg2[%c68, %c0_16] : memref<72x128xf32, #tpu.memory_space<vmem>>, vector<1x64xf32>
    %62 = vector.broadcast %61 : vector<1x64xf32> to vector<8x64xf32>
    %63 = arith.addf %60, %62 : vector<8x64xf32>
    %cst_17 = arith.constant 0.000000e+00 : f32
    %64 = vector.broadcast %cst_17 : f32 to vector<8x64xf32>
    %65 = arith.maximumf %63, %64 : vector<8x64xf32>
    %c0_18 = arith.constant 0 : index
    %c0_19 = arith.constant 0 : index
    %66 = vector.load %arg2[%c0_18, %c0_19] : memref<72x128xf32, #tpu.memory_space<vmem>>, vector<64x64xf32>
    %cst_20 = arith.constant dense<0.000000e+00> : vector<8x64xf32>
    %67 = tpu.matmul %65, %66, %cst_20 {dimension_numbers = #tpu.dot_dimension_numbers<[1], [0], [0], [1], [0, 0, 1, 1], [], []>} : vector<8x64xf32>, vector<64x64xf32>, vector<8x64xf32> -> vector<8x64xf32>
    %c69 = arith.constant 69 : index
    %c0_21 = arith.constant 0 : index
    %68 = vector.load %arg2[%c69, %c0_21] : memref<72x128xf32, #tpu.memory_space<vmem>>, vector<1x64xf32>
    %69 = vector.broadcast %68 : vector<1x64xf32> to vector<8x64xf32>
    %70 = arith.addf %67, %69 : vector<8x64xf32>
    %71 = vector.extract_strided_slice %70 {offsets = [0, 0], sizes = [8, 32], strides = [1, 1]} : vector<8x64xf32> to vector<8x32xf32>
    %72 = vector.extract_strided_slice %70 {offsets = [0, 32], sizes = [8, 32], strides = [1, 1]} : vector<8x64xf32> to vector<8x32xf32>
    %cst_22 = arith.constant dense<0.000000e+00> : vector<64x32xf32>
    %73 = tpu.matmul %13, %71, %cst_22 {dimension_numbers = #tpu.dot_dimension_numbers<[1], [0], [0], [1], [0, 0, 1, 1], [], []>} : vector<64x8xf32>, vector<8x32xf32>, vector<64x32xf32> -> vector<64x32xf32>
    %cst_23 = arith.constant dense<0.000000e+00> : vector<64x32xf32>
    %74 = tpu.matmul %8, %72, %cst_23 {dimension_numbers = #tpu.dot_dimension_numbers<[1], [0], [0], [1], [0, 0, 1, 1], [], []>} : vector<64x8xf32>, vector<8x32xf32>, vector<64x32xf32> -> vector<64x32xf32>
    %75 = arith.addf %74, %73 : vector<64x32xf32>
    %cst_24 = arith.constant 0.000000e+00 : f32
    %76 = vector.broadcast %cst_24 : f32 to vector<64x32xf32>
    %77 = arith.cmpf ogt, %75, %76 : vector<64x32xf32>
    %cst_25 = arith.constant 2.000000e-01 : f32
    %78 = vector.broadcast %cst_25 : f32 to vector<64x32xf32>
    %79 = arith.mulf %78, %75 : vector<64x32xf32>
    %80 = arith.select %77, %75, %79 : vector<64x32xi1>, vector<64x32xf32>
    %c0_26 = arith.constant 0 : index
    %c96 = arith.constant 96 : index
    %81 = vector.load %arg2[%c0_26, %c96] : memref<72x128xf32, #tpu.memory_space<vmem>>, vector<32x2xf32>
    %cst_27 = arith.constant dense<0.000000e+00> : vector<64x2xf32>
    %82 = tpu.matmul %80, %81, %cst_27 {dimension_numbers = #tpu.dot_dimension_numbers<[1], [0], [0], [1], [0, 0, 1, 1], [], []>} : vector<64x32xf32>, vector<32x2xf32>, vector<64x2xf32> -> vector<64x2xf32>
    %83 = vector.broadcast %35 : vector<64x1xf32> to vector<64x2xf32>
    %84 = arith.addf %82, %83 : vector<64x2xf32>
    %85 = math.exp %84 : vector<64x2xf32>
    %cst_28 = arith.constant dense<0.000000e+00> : vector<64x32xf32>
    %86 = tpu.matmul %85, %34, %cst_28 {dimension_numbers = #tpu.dot_dimension_numbers<[1], [0], [0], [1], [0, 0, 1, 1], [], []>} : vector<64x2xf32>, vector<2x32xf32>, vector<64x32xf32> -> vector<64x32xf32>
    %87 = arith.mulf %86, %73 : vector<64x32xf32>
    %cst_29 = arith.constant dense<0.000000e+00> : vector<8x32xf32>
    %88 = tpu.matmul %20, %87, %cst_29 {dimension_numbers = #tpu.dot_dimension_numbers<[1], [0], [0], [1], [0, 0, 1, 1], [], []>} : vector<8x64xf32>, vector<64x32xf32>, vector<8x32xf32> -> vector<8x32xf32>
    %cst_30 = arith.constant dense<0.000000e+00> : vector<8x2xf32>
    %89 = tpu.matmul %20, %85, %cst_30 {dimension_numbers = #tpu.dot_dimension_numbers<[1], [0], [0], [1], [0, 0, 1, 1], [], []>} : vector<8x64xf32>, vector<64x2xf32>, vector<8x2xf32> -> vector<8x2xf32>
    %90 = tpu.reciprocal %89 {approx = true} : vector<8x2xf32> -> vector<8x2xf32>
    %cst_31 = arith.constant dense<0.000000e+00> : vector<8x32xf32>
    %91 = tpu.matmul %90, %34, %cst_31 {dimension_numbers = #tpu.dot_dimension_numbers<[1], [0], [0], [1], [0, 0, 1, 1], [], []>} : vector<8x2xf32>, vector<2x32xf32>, vector<8x32xf32> -> vector<8x32xf32>
    %92 = arith.mulf %88, %91 : vector<8x32xf32>
    %c70 = arith.constant 70 : index
    %c0_32 = arith.constant 0 : index
    %93 = vector.load %arg2[%c70, %c0_32] : memref<72x128xf32, #tpu.memory_space<vmem>>, vector<1x32xf32>
    %94 = vector.broadcast %93 : vector<1x32xf32> to vector<8x32xf32>
    %95 = arith.addf %92, %94 : vector<8x32xf32>
    %c0_33 = arith.constant 0 : index
    %c64_34 = arith.constant 64 : index
    %96 = vector.load %arg2[%c0_33, %c64_34] : memref<72x128xf32, #tpu.memory_space<vmem>>, vector<32x32xf32>
    %cst_35 = arith.constant dense<0.000000e+00> : vector<8x32xf32>
    %97 = tpu.matmul %95, %96, %cst_35 {dimension_numbers = #tpu.dot_dimension_numbers<[1], [0], [0], [1], [0, 0, 1, 1], [], []>} : vector<8x32xf32>, vector<32x32xf32>, vector<8x32xf32> -> vector<8x32xf32>
    %c70_36 = arith.constant 70 : index
    %c32_37 = arith.constant 32 : index
    %98 = vector.load %arg2[%c70_36, %c32_37] : memref<72x128xf32, #tpu.memory_space<vmem>>, vector<1x32xf32>
    %99 = vector.broadcast %98 : vector<1x32xf32> to vector<8x32xf32>
    %100 = arith.addf %97, %99 : vector<8x32xf32>
    %101 = vector.extract_strided_slice %100 {offsets = [0, 0], sizes = [8, 8], strides = [1, 1]} : vector<8x32xf32> to vector<8x8xf32>
    %102 = vector.extract_strided_slice %100 {offsets = [0, 8], sizes = [8, 8], strides = [1, 1]} : vector<8x32xf32> to vector<8x8xf32>
    %103 = vector.extract_strided_slice %100 {offsets = [0, 16], sizes = [8, 8], strides = [1, 1]} : vector<8x32xf32> to vector<8x8xf32>
    %104 = vector.extract_strided_slice %100 {offsets = [0, 24], sizes = [8, 8], strides = [1, 1]} : vector<8x32xf32> to vector<8x8xf32>
    %cst_38 = arith.constant dense<0.000000e+00> : vector<8x8xf32>
    %105 = tpu.matmul %101, %102, %cst_38 {dimension_numbers = #tpu.dot_dimension_numbers<[1], [1], [0], [0], [0, 0, 1, 0], [], []>} : vector<8x8xf32>, vector<8x8xf32>, vector<8x8xf32> -> vector<8x8xf32>
    %cst_39 = arith.constant 0.377964467 : f32
    %106 = vector.broadcast %cst_39 : f32 to vector<8x8xf32>
    %107 = arith.mulf %105, %106 : vector<8x8xf32>
    %108 = arith.addf %107, %36 : vector<8x8xf32>
    %109 = math.exp %108 : vector<8x8xf32>
    %cst_40 = arith.constant dense<0.000000e+00> : vector<8xf32>
    %110 = vector.multi_reduction <add>, %109, %cst_40 [1] : vector<8x8xf32> to vector<8xf32>
    %111 = vector.shape_cast %110 : vector<8xf32> to vector<8x1xf32>
    %112 = tpu.reciprocal %111 {approx = true} : vector<8x1xf32> -> vector<8x1xf32>
    %cst_41 = arith.constant dense<0.000000e+00> : vector<8x8xf32>
    %113 = tpu.matmul %109, %103, %cst_41 {dimension_numbers = #tpu.dot_dimension_numbers<[1], [0], [0], [1], [0, 0, 1, 1], [], []>} : vector<8x8xf32>, vector<8x8xf32>, vector<8x8xf32> -> vector<8x8xf32>
    %114 = vector.broadcast %112 : vector<8x1xf32> to vector<8x8xf32>
    %115 = arith.mulf %113, %114 : vector<8x8xf32>
    %116 = arith.addf %115, %104 : vector<8x8xf32>
    %c0_42 = arith.constant 0 : index
    %c0_43 = arith.constant 0 : index
    %c0_44 = arith.constant 0 : index
    %117 = vector.load %arg3[%c0_42, %c0_43, %c0_44] : memref<1x8x8xf32, #tpu.memory_space<vmem>>, vector<1x8x8xf32>
    %118 = vector.shape_cast %117 : vector<1x8x8xf32> to vector<8x8xf32>
    %119 = vector.shape_cast %116 : vector<8x8xf32> to vector<1x8x8xf32>
    tpu.vector_store %arg3[%c0_42, %c0_43, %c0_44], %119 {strides = array<i32>} : memref<1x8x8xf32, #tpu.memory_space<vmem>>, vector<1x8x8xf32>,
    return
  }
  func.func @transform_0(%arg0: i32) -> (i32, i32, i32) {
    %c0_i32 = arith.constant 0 : i32
    %c0_i32_0 = arith.constant 0 : i32
    %c0_i32_1 = arith.constant 0 : i32
    return %arg0, %c0_i32, %c0_i32_0 : i32, i32, i32
  }
  func.func @transform_1(%arg0: i32) -> (i32, i32) {
    %c0_i32 = arith.constant 0 : i32
    %c0_i32_0 = arith.constant 0 : i32
    %c0_i32_1 = arith.constant 0 : i32
    return %c0_i32, %c0_i32_0 : i32, i32
  }
  func.func @transform_2(%arg0: i32) -> (i32, i32, i32) {
    %c0_i32 = arith.constant 0 : i32
    %c0_i32_0 = arith.constant 0 : i32
    %c0_i32_1 = arith.constant 0 : i32
    return %arg0, %c0_i32, %c0_i32_0 : i32, i32, i32
  }
}

</mosaic_0001>

<llo_original>
// kernel: attention_gnn.1
$region0: #{attention_gnn.1}
  #allocation0 [shape = 'u32[]', space=smem, size = 0x4, offset = 0x4, fixed_abs, tag = 'smem constant byte address 0x4 - core index']
  #allocation1 [shape = 'u32[144,128]{1,0:T(1,128)}', space=vmem, size = 0x12000, scoped, tag = 'internal scratch']
  %s0 = inlined_call_operand.vmem [shape: f32[1,8,3], index: 0, kind: input, shape index: {}]
  %s1 = inlined_call_operand.hbm [shape: f32[72,128], index: 1, kind: input, shape index: {}]
  %s2 = inlined_call_operand.vmem [shape: f32[1,8,8], index: 2, kind: output, shape index: {}]
  %s3 = sld [smem:[#allocation0]]
  $region22: #{attention_gnn.1} parent=0
    _
  %s5 = ssub.s32 1, %s3
  %s6 = scalar_select 0, %s5, %s3
  $region1: #{attention_gnn.1} parent=0
    #allocation2 [shape = 'u8[36864]{0}', space=vmem, size = 0x9000, scoped, tag = 'input window, operand 1, single buffered']
    #allocation3 [shape = 's32[1]{0}', space=sflag, size = 0x4, scoped, tag = 'scoped memory for attention_gnn.1']
    %7 = vsyncpa [#allocation3], 0
    // Predicated region
    $region2: #{attention_gnn.1} parent=1 // pred_check
      _
    $region3: #{attention_gnn.1} parent=1 // pred_check_branch
      %9 = sbr.rel (0) target = $region5
    $region4: #{attention_gnn.1} parent=1 // pred_region
      _
    $region5: #{attention_gnn.1} parent=1 // pred_fallthru
      _
    // Predicated region
    $region6: #{attention_gnn.1} parent=1 // pred_check
      _
    $region7: #{attention_gnn.1} parent=1 // pred_check_branch
      %11 = sbr.rel (0) target = $region9
    $region8: #{attention_gnn.1} parent=1 // pred_region
      %s13 = ssub.s32 1152, 1152
      %14 = vsyncadd [#allocation3], %s13
      %s15 = sshll.u32 [#allocation2], 4
      %s16 = int_to_ptr.vmem [resolvable:$true] %s15
      %21 = dma.hbm_to_vmem [thread:$0]  %s1, 1152, %s16, [#allocation3], 128, 128, 8
    $region9: #{attention_gnn.1} parent=1 // pred_fallthru
      _
    // Predicated region
    $region10: #{attention_gnn.1} parent=1 // pred_check
      _
    $region11: #{attention_gnn.1} parent=1 // pred_check_branch
      %23 = sbr.rel (0) target = $region13
    $region12: #{attention_gnn.1} parent=1 // pred_region
      %24 = dma.done [#allocation3], 1152
    $region13: #{attention_gnn.1} parent=1 // pred_fallthru
      _
    %v25 = vld [vmem:[%s0] sm:$0xff]
    %v26 = vlaneseq
    %v27 = vshrl.u32 %v26, 7
    %v28 = vadd.s32 %v27, 8
    %v29 = vadd.s32 %v27, 16
    %v30 = vadd.s32 %v27, 24
    %v31 = vadd.s32 %v27, 32
    %v32 = vadd.s32 %v27, 40
    %v33 = vadd.s32 %v27, 48
    %v34 = vadd.s32 %v27, 56
    %v35 = vlaneseq
    %v36 = vand.u32 %v35, 127
    %v37 = vshra.s32 %v27, 3
    %v38 = vshra.s32 %v28, 3
    %v39 = vshra.s32 %v29, 3
    %v40 = vshra.s32 %v30, 3
    %v41 = vshra.s32 %v31, 3
    %v42 = vshra.s32 %v32, 3
    %v43 = vshra.s32 %v33, 3
    %v44 = vshra.s32 %v34, 3
    %vm45 = vcmp.eq.s32.totalorder %v37, %v36
    %vm46 = vcmp.eq.s32.totalorder %v38, %v36
    %vm47 = vcmp.eq.s32.totalorder %v39, %v36
    %vm48 = vcmp.eq.s32.totalorder %v40, %v36
    %vm49 = vcmp.eq.s32.totalorder %v41, %v36
    %vm50 = vcmp.eq.s32.totalorder %v42, %v36
    %vm51 = vcmp.eq.s32.totalorder %v43, %v36
    %vm52 = vcmp.eq.s32.totalorder %v44, %v36
    %v53 = vsel %vm45, 1, 0
    %v54 = vsel %vm46, 1, 0
    %v55 = vsel %vm47, 1, 0
    %v56 = vsel %vm48, 1, 0
    %v57 = vsel %vm49, 1, 0
    %v58 = vsel %vm50, 1, 0
    %v59 = vsel %vm51, 1, 0
    %v60 = vsel %vm52, 1, 0
    %v61 = vcvt.s32.f32 %v53
    %v62 = vcvt.s32.f32 %v54
    %v63 = vcvt.s32.f32 %v55
    %v64 = vcvt.s32.f32 %v56
    %v65 = vcvt.s32.f32 %v57
    %v66 = vcvt.s32.f32 %v58
    %v67 = vcvt.s32.f32 %v59
    %v68 = vcvt.s32.f32 %v60
    %v69 = vand.u32 %v27, 7
    %v70 = vand.u32 %v28, 7
    %v71 = vand.u32 %v29, 7
    %v72 = vand.u32 %v30, 7
    %v73 = vand.u32 %v31, 7
    %v74 = vand.u32 %v32, 7
    %v75 = vand.u32 %v33, 7
    %v76 = vand.u32 %v34, 7
    %vm77 = vcmp.eq.s32.totalorder %v69, %v36
    %vm78 = vcmp.eq.s32.totalorder %v70, %v36
    %vm79 = vcmp.eq.s32.totalorder %v71, %v36
    %vm80 = vcmp.eq.s32.totalorder %v72, %v36
    %vm81 = vcmp.eq.s32.totalorder %v73, %v36
    %vm82 = vcmp.eq.s32.totalorder %v74, %v36
    %vm83 = vcmp.eq.s32.totalorder %v75, %v36
    %vm84 = vcmp.eq.s32.totalorder %v76, %v36
    %v85 = vsel %vm77, 1, 0
    %v86 = vsel %vm78, 1, 0
    %v87 = vsel %vm79, 1, 0
    %v88 = vsel %vm80, 1, 0
    %v89 = vsel %vm81, 1, 0
    %v90 = vsel %vm82, 1, 0
    %v91 = vsel %vm83, 1, 0
    %v92 = vsel %vm84, 1, 0
    %v93 = vcvt.s32.f32 %v85
    %v94 = vcvt.s32.f32 %v86
    %v95 = vcvt.s32.f32 %v87
    %v96 = vcvt.s32.f32 %v88
    %v97 = vcvt.s32.f32 %v89
    %v98 = vcvt.s32.f32 %v90
    %v99 = vcvt.s32.f32 %v91
    %v100 = vcvt.s32.f32 %v92
    %v101 = vshra.s32 %v36, 3
    %vm102 = vcmp.eq.s32.totalorder %v101, %v27
    %v103 = vsel %vm102, 1, 0
    %v104 = vcvt.s32.f32 %v103
    %v105 = vshra.s32 %v36, 4
    %vm106 = vcmp.eq.s32.totalorder %v105, %v27
    %v107 = vsel %vm106, 1, 0
    %v108 = vcvt.s32.f32 %v107
    %v109 = vld [vmem:[#allocation2] sm:$0xff]
    %v110 = vld [vmem:[#allocation2 + $0x8] sm:$0xff]
    %v111 = vld [vmem:[#allocation2 + $0x10] sm:$0xff]
    %v112 = vld [vmem:[#allocation2 + $0x18] sm:$0xff]
    %v113 = vld [vmem:[#allocation2 + $0x20] sm:$0xff]
    %v114 = vld [vmem:[#allocation2 + $0x28] sm:$0xff]
    %v115 = vld [vmem:[#allocation2 + $0x30] sm:$0xff]
    %v116 = vld [vmem:[#allocation2 + $0x38] sm:$0xff]
    %v117 = vld [vmem:[#allocation2 + $0x40] sm:$0x7]
    %vm118 = vcmask 23552
    %v120 = vsel %vm118, %v25, 0
    %vm122 = vcmask 1042432
    %v124 = vsel %vm122, %v117, 0
    %126 = vmatprep.subr.mxu0 0.0
    %127 = vmatpush1.msra.mxu0 %v124
    %128 = vmatprep.subr.mxu0 0.0
    %129 = vmatpush1.msra.mxu0 0.0
    %130 = vmatprep.subr.mxu0 0.0
    %131 = vmatpush1.msra.mxu0 0.0
    %132 = vmatprep.subr.mxu0 0.0
    %133 = vmatpush1.msra.mxu0 0.0
    %134 = vmatprep.subr.mxu0 0.0
    %135 = vmatpush1.msra.mxu0 0.0
    %136 = vmatprep.subr.mxu0 0.0
    %137 = vmatpush1.msra.mxu0 0.0
    %138 = vmatprep.subr.mxu0 0.0
    %139 = vmatpush1.msra.mxu0 0.0
    %140 = vmatprep.subr.mxu0 0.0
    %141 = vmatpush1.msra.mxu0 0.0
    %142 = vmatprep.subr.mxu0 0.0
    %143 = vmatpush1.msra.mxu0 0.0
    %144 = vmatprep.subr.mxu0 0.0
    %145 = vmatpush1.msra.mxu0 0.0
    %146 = vmatprep.subr.mxu0 0.0
    %147 = vmatpush1.msra.mxu0 0.0
    %148 = vmatprep.subr.mxu0 0.0
    %149 = vmatpush1.msra.mxu0 0.0
    %150 = vmatprep.subr.mxu0 0.0
    %151 = vmatpush1.msra.mxu0 0.0
    %152 = vmatprep.subr.mxu0 0.0
    %153 = vmatpush1.msra.mxu0 0.0
    %154 = vmatprep.subr.mxu0 0.0
    %155 = vmatpush1.msra.mxu0 0.0
    %156 = vmatprep.subr.mxu0 0.0
    %157 = vmatpush1.msra.mxu0 0.0
    %158 = vmatprep.subr.mxu0 0.0
    %159 = vmatpush1.msra.mxu0 0.0
    %160 = vmatprep.subr.mxu0 0.0
    %161 = vmatpush1.msra.mxu0 0.0
    %162 = vmatprep.subr.mxu0 0.0
    %163 = vmatpush1.msra.mxu0 0.0
    %164 = vmatprep.subr.mxu0 0.0
    %165 = vmatpush1.msra.mxu0 0.0
    %166 = vmatprep.subr.mxu0 0.0
    %167 = vmatpush1.msra.mxu0 0.0
    %168 = vmatprep.subr.mxu0 0.0
    %169 = vmatpush1.msra.mxu0 0.0
    %170 = vmatprep.subr.mxu0 0.0
    %171 = vmatpush1.msra.mxu0 0.0
    %172 = vmatprep.subr.mxu0 0.0
    %173 = vmatpush1.msra.mxu0 0.0
    %174 = vmatprep.subr.mxu0 0.0
    %175 = vmatpush1.msra.mxu0 0.0
    %176 = vmatprep.subr.mxu0 0.0
    %177 = vmatpush1.msra.mxu0 0.0
    %178 = vmatprep.subr.mxu0 0.0
    %179 = vmatpush1.msra.mxu0 0.0
    %180 = vmatprep.subr.mxu0 0.0
    %181 = vmatpush1.msra.mxu0 0.0
    %182 = vmatprep.subr.mxu0 0.0
    %183 = vmatpush1.msra.mxu0 0.0
    %184 = vmatprep.subr.mxu0 0.0
    %185 = vmatpush1.msra.mxu0 0.0
    %186 = vmatprep.subr.mxu0 0.0
    %187 = vmatpush1.msra.mxu0 0.0
    %188 = vmatprep.subr.mxu0 0.0
    %189 = vmatpush1.msra.mxu0 0.0
    %190 = vmatprep.mubr.f32.mxu0 0.0
    %191 = vmatmul.mubr.f32.gmra.mrb[0].mxu0 %v120
    %v192 = vpop.f32.mrb[0].mxu0
    %v193 = vadd.f32 0.0, %v192
    %v194 = vpop.f32.mrb[0].mxu0
    %195 = vdwg.mxu0
    %197 = vrot.lane.b32.xlu0 %v193, 60
    %v198 = vpop.permute.xlu0 %197
    %vm200 = vcmask 64512
    %v202 = vsel %vm200, %v93, 0
    %v205 = vsel %vm200, %v94, 0
    %v208 = vsel %vm200, %v95, 0
    %v211 = vsel %vm200, %v96, 0
    %v214 = vsel %vm200, %v97, 0
    %v217 = vsel %vm200, %v98, 0
    %v220 = vsel %vm200, %v99, 0
    %v223 = vsel %vm200, %v100, 0
    %225 = vmatprep.subr.mxu0 0.0
    %226 = vmatpush1.msra.mxu0 %v198
    %227 = vmatprep.subr.mxu0 0.0
    %228 = vmatpush1.msra.mxu0 0.0
    %229 = vmatprep.subr.mxu0 0.0
    %230 = vmatpush1.msra.mxu0 0.0
    %231 = vmatprep.subr.mxu0 0.0
    %232 = vmatpush1.msra.mxu0 0.0
    %233 = vmatprep.subr.mxu0 0.0
    %234 = vmatpush1.msra.mxu0 0.0
    %235 = vmatprep.subr.mxu0 0.0
    %236 = vmatpush1.msra.mxu0 0.0
    %237 = vmatprep.subr.mxu0 0.0
    %238 = vmatpush1.msra.mxu0 0.0
    %239 = vmatprep.subr.mxu0 0.0
    %240 = vmatpush1.msra.mxu0 0.0
    %241 = vmatprep.subr.mxu0 0.0
    %242 = vmatpush1.msra.mxu0 0.0
    %243 = vmatprep.subr.mxu0 0.0
    %244 = vmatpush1.msra.mxu0 0.0
    %245 = vmatprep.subr.mxu0 0.0
    %246 = vmatpush1.msra.mxu0 0.0
    %247 = vmatprep.subr.mxu0 0.0
    %248 = vmatpush1.msra.mxu0 0.0
    %249 = vmatprep.subr.mxu0 0.0
    %250 = vmatpush1.msra.mxu0 0.0
    %251 = vmatprep.subr.mxu0 0.0
    %252 = vmatpush1.msra.mxu0 0.0
    %253 = vmatprep.subr.mxu0 0.0
    %254 = vmatpush1.msra.mxu0 0.0
    %255 = vmatprep.subr.mxu0 0.0
    %256 = vmatpush1.msra.mxu0 0.0
    %257 = vmatprep.subr.mxu0 0.0
    %258 = vmatpush1.msra.mxu0 0.0
    %259 = vmatprep.subr.mxu0 0.0
    %260 = vmatpush1.msra.mxu0 0.0
    %261 = vmatprep.subr.mxu0 0.0
    %262 = vmatpush1.msra.mxu0 0.0
    %263 = vmatprep.subr.mxu0 0.0
    %264 = vmatpush1.msra.mxu0 0.0
    %265 = vmatprep.subr.mxu0 0.0
    %266 = vmatpush1.msra.mxu0 0.0
    %267 = vmatprep.subr.mxu0 0.0
    %268 = vmatpush1.msra.mxu0 0.0
    %269 = vmatprep.subr.mxu0 0.0
    %270 = vmatpush1.msra.mxu0 0.0
    %271 = vmatprep.subr.mxu0 0.0
    %272 = vmatpush1.msra.mxu0 0.0
    %273 = vmatprep.subr.mxu0 0.0
    %274 = vmatpush1.msra.mxu0 0.0
    %275 = vmatprep.subr.mxu0 0.0
    %276 = vmatpush1.msra.mxu0 0.0
    %277 = vmatprep.subr.mxu0 0.0
    %278 = vmatpush1.msra.mxu0 0.0
    %279 = vmatprep.subr.mxu0 0.0
    %280 = vmatpush1.msra.mxu0 0.0
    %281 = vmatprep.subr.mxu0 0.0
    %282 = vmatpush1.msra.mxu0 0.0
    %283 = vmatprep.subr.mxu0 0.0
    %284 = vmatpush1.msra.mxu0 0.0
    %285 = vmatprep.subr.mxu0 0.0
    %286 = vmatpush1.msra.mxu0 0.0
    %287 = vmatprep.subr.mxu0 0.0
    %288 = vmatpush1.msra.mxu0 0.0
    %289 = vmatprep.mubr.f32.mxu0 0.0
    %290 = vmatmul.mubr.f32.gmra.mrb[0].mxu0 %v202
    %v291 = vpop.f32.mrb[0].mxu0
    %v292 = vadd.f32 0.0, %v291
    %v293 = vpop.f32.mrb[0].mxu0
    %294 = vmatprep.mubr.f32.mxu0 0.0
    %295 = vmatmul.mubr.f32.gmra.mrb[0].mxu0 %v205
    %v296 = vpop.f32.mrb[0].mxu0
    %v297 = vadd.f32 0.0, %v296
    %v298 = vpop.f32.mrb[0].mxu0
    %299 = vmatprep.mubr.f32.mxu0 0.0
    %300 = vmatmul.mubr.f32.gmra.mrb[0].mxu0 %v208
    %v301 = vpop.f32.mrb[0].mxu0
    %v302 = vadd.f32 0.0, %v301
    %v303 = vpop.f32.mrb[0].mxu0
    %304 = vmatprep.mubr.f32.mxu0 0.0
    %305 = vmatmul.mubr.f32.gmra.mrb[0].mxu0 %v211
    %v306 = vpop.f32.mrb[0].mxu0
    %v307 = vadd.f32 0.0, %v306
    %v308 = vpop.f32.mrb[0].mxu0
    %309 = vmatprep.mubr.f32.mxu0 0.0
    %310 = vmatmul.mubr.f32.gmra.mrb[0].mxu0 %v214
    %v311 = vpop.f32.mrb[0].mxu0
    %v312 = vadd.f32 0.0, %v311
    %v313 = vpop.f32.mrb[0].mxu0
    %314 = vmatprep.mubr.f32.mxu0 0.0
    %315 = vmatmul.mubr.f32.gmra.mrb[0].mxu0 %v217
    %v316 = vpop.f32.mrb[0].mxu0
    %v317 = vadd.f32 0.0, %v316
    %v318 = vpop.f32.mrb[0].mxu0
    %319 = vmatprep.mubr.f32.mxu0 0.0
    %320 = vmatmul.mubr.f32.gmra.mrb[0].mxu0 %v220
    %v321 = vpop.f32.mrb[0].mxu0
    %v322 = vadd.f32 0.0, %v321
    %v323 = vpop.f32.mrb[0].mxu0
    %324 = vmatprep.mubr.f32.mxu0 0.0
    %325 = vmatmul.mubr.f32.gmra.mrb[0].mxu0 %v223
    %v326 = vpop.f32.mrb[0].mxu0
    %v327 = vadd.f32 0.0, %v326
    %v328 = vpop.f32.mrb[0].mxu0
    %329 = vdwg.mxu0
    %330 = vrot.lane.b32.xlu0 %v193, 64
    %v331 = vpop.permute.xlu0 %330
    %v334 = vsel %vm200, %v61, 0
    %v337 = vsel %vm200, %v62, 0
    %v340 = vsel %vm200, %v63, 0
    %v343 = vsel %vm200, %v64, 0
    %v346 = vsel %vm200, %v65, 0
    %v349 = vsel %vm200, %v66, 0
    %v352 = vsel %vm200, %v67, 0
    %v355 = vsel %vm200, %v68, 0
    %357 = vmatprep.subr.mxu0 0.0
    %358 = vmatpush1.msra.mxu0 %v331
    %359 = vmatprep.subr.mxu0 0.0
    %360 = vmatpush1.msra.mxu0 0.0
    %361 = vmatprep.subr.mxu0 0.0
    %362 = vmatpush1.msra.mxu0 0.0
    %363 = vmatprep.subr.mxu0 0.0
    %364 = vmatpush1.msra.mxu0 0.0
    %365 = vmatprep.subr.mxu0 0.0
    %366 = vmatpush1.msra.mxu0 0.0
    %367 = vmatprep.subr.mxu0 0.0
    %368 = vmatpush1.msra.mxu0 0.0
    %369 = vmatprep.subr.mxu0 0.0
    %370 = vmatpush1.msra.mxu0 0.0
    %371 = vmatprep.subr.mxu0 0.0
    %372 = vmatpush1.msra.mxu0 0.0
    %373 = vmatprep.subr.mxu0 0.0
    %374 = vmatpush1.msra.mxu0 0.0
    %375 = vmatprep.subr.mxu0 0.0
    %376 = vmatpush1.msra.mxu0 0.0
    %377 = vmatprep.subr.mxu0 0.0
    %378 = vmatpush1.msra.mxu0 0.0
    %379 = vmatprep.subr.mxu0 0.0
    %380 = vmatpush1.msra.mxu0 0.0
    %381 = vmatprep.subr.mxu0 0.0
    %382 = vmatpush1.msra.mxu0 0.0
    %383 = vmatprep.subr.mxu0 0.0
    %384 = vmatpush1.msra.mxu0 0.0
    %385 = vmatprep.subr.mxu0 0.0
    %386 = vmatpush1.msra.mxu0 0.0
    %387 = vmatprep.subr.mxu0 0.0
    %388 = vmatpush1.msra.mxu0 0.0
    %389 = vmatprep.subr.mxu0 0.0
    %390 = vmatpush1.msra.mxu0 0.0
    %391 = vmatprep.subr.mxu0 0.0
    %392 = vmatpush1.msra.mxu0 0.0
    %393 = vmatprep.subr.mxu0 0.0
    %394 = vmatpush1.msra.mxu0 0.0
    %395 = vmatprep.subr.mxu0 0.0
    %396 = vmatpush1.msra.mxu0 0.0
    %397 = vmatprep.subr.mxu0 0.0
    %398 = vmatpush1.msra.mxu0 0.0
    %399 = vmatprep.subr.mxu0 0.0
    %400 = vmatpush1.msra.mxu0 0.0
    %401 = vmatprep.subr.mxu0 0.0
    %402 = vmatpush1.msra.mxu0 0.0
    %403 = vmatprep.subr.mxu0 0.0
    %404 = vmatpush1.msra.mxu0 0.0
    %405 = vmatprep.subr.mxu0 0.0
    %406 = vmatpush1.msra.mxu0 0.0
    %407 = vmatprep.subr.mxu0 0.0
    %408 = vmatpush1.msra.mxu0 0.0
    %409 = vmatprep.subr.mxu0 0.0
    %410 = vmatpush1.msra.mxu0 0.0
    %411 = vmatprep.subr.mxu0 0.0
    %412 = vmatpush1.msra.mxu0 0.0
    %413 = vmatprep.subr.mxu0 0.0
    %414 = vmatpush1.msra.mxu0 0.0
    %415 = vmatprep.subr.mxu0 0.0
    %416 = vmatpush1.msra.mxu0 0.0
    %417 = vmatprep.subr.mxu0 0.0
    %418 = vmatpush1.msra.mxu0 0.0
    %419 = vmatprep.subr.mxu0 0.0
    %420 = vmatpush1.msra.mxu0 0.0
    %421 = vmatprep.mubr.f32.mxu0 0.0
    %422 = vmatmul.mubr.f32.gmra.mrb[0].mxu0 %v334
    %v423 = vpop.f32.mrb[0].mxu0
    %v424 = vadd.f32 %v292, %v423
    %v425 = vpop.f32.mrb[0].mxu0
    %426 = vmatprep.mubr.f32.mxu0 0.0
    %427 = vmatmul.mubr.f32.gmra.mrb[0].mxu0 %v337
    %v428 = vpop.f32.mrb[0].mxu0
    %v429 = vadd.f32 %v297, %v428
    %v430 = vpop.f32.mrb[0].mxu0
    %431 = vmatprep.mubr.f32.mxu0 0.0
    %432 = vmatmul.mubr.f32.gmra.mrb[0].mxu0 %v340
    %v433 = vpop.f32.mrb[0].mxu0
    %v434 = vadd.f32 %v302, %v433
    %v435 = vpop.f32.mrb[0].mxu0
    %436 = vmatprep.mubr.f32.mxu0 0.0
    %437 = vmatmul.mubr.f32.gmra.mrb[0].mxu0 %v343
    %v438 = vpop.f32.mrb[0].mxu0
    %v439 = vadd.f32 %v307, %v438
    %v440 = vpop.f32.mrb[0].mxu0
    %441 = vmatprep.mubr.f32.mxu0 0.0
    %442 = vmatmul.mubr.f32.gmra.mrb[0].mxu0 %v346
    %v443 = vpop.f32.mrb[0].mxu0
    %v444 = vadd.f32 %v312, %v443
    %v445 = vpop.f32.mrb[0].mxu0
    %446 = vmatprep.mubr.f32.mxu0 0.0
    %447 = vmatmul.mubr.f32.gmra.mrb[0].mxu0 %v349
    %v448 = vpop.f32.mrb[0].mxu0
    %v449 = vadd.f32 %v317, %v448
    %v450 = vpop.f32.mrb[0].mxu0
    %451 = vmatprep.mubr.f32.mxu0 0.0
    %452 = vmatmul.mubr.f32.gmra.mrb[0].mxu0 %v352
    %v453 = vpop.f32.mrb[0].mxu0
    %v454 = vadd.f32 %v322, %v453
    %v455 = vpop.f32.mrb[0].mxu0
    %456 = vmatprep.mubr.f32.mxu0 0.0
    %457 = vmatmul.mubr.f32.gmra.mrb[0].mxu0 %v355
    %v458 = vpop.f32.mrb[0].mxu0
    %v459 = vadd.f32 %v327, %v458
    %v460 = vpop.f32.mrb[0].mxu0
    %461 = vdwg.mxu0
    %vm462 = vcmp.gt.f32.partialorder %v424, 0.0
    %vm463 = vcmp.gt.f32.partialorder %v429, 0.0
    %vm464 = vcmp.gt.f32.partialorder %v434, 0.0
    %vm465 = vcmp.gt.f32.partialorder %v439, 0.0
    %vm466 = vcmp.gt.f32.partialorder %v444, 0.0
    %vm467 = vcmp.gt.f32.partialorder %v449, 0.0
    %vm468 = vcmp.gt.f32.partialorder %v454, 0.0
    %vm469 = vcmp.gt.f32.partialorder %v459, 0.0
    %v470 = vmul.f32 %v424, 0.2
    %v471 = vmul.f32 %v429, 0.2
    %v472 = vmul.f32 %v434, 0.2
    %v473 = vmul.f32 %v439, 0.2
    %v474 = vmul.f32 %v444, 0.2
    %v475 = vmul.f32 %v449, 0.2
    %v476 = vmul.f32 %v454, 0.2
    %v477 = vmul.f32 %v459, 0.2
    %v478 = vsel %vm462, %v424, %v470
    %v479 = vsel %vm463, %v429, %v471
    %v480 = vsel %vm464, %v434, %v472
    %v481 = vsel %vm465, %v439, %v473
    %v482 = vsel %vm466, %v444, %v474
    %v483 = vsel %vm467, %v449, %v475
    %v484 = vsel %vm468, %v454, %v476
    %v485 = vsel %vm469, %v459, %v477
    %487 = vset.pattern.permute.xlu0 120
    %488 = vperm.xlu0 %487, %v109
    %v489 = vpop.permute.xlu0 %488
    %492 = vset.pattern.permute.xlu0 120
    %493 = vperm.xlu0 %492, %v110
    %v494 = vpop.permute.xlu0 %493
    %497 = vset.pattern.permute.xlu0 120
    %498 = vperm.xlu0 %497, %v111
    %v499 = vpop.permute.xlu0 %498
    %502 = vset.pattern.permute.xlu0 120
    %503 = vperm.xlu0 %502, %v112
    %v504 = vpop.permute.xlu0 %503
    %507 = vset.pattern.permute.xlu0 120
    %508 = vperm.xlu0 %507, %v113
    %v509 = vpop.permute.xlu0 %508
    %512 = vset.pattern.permute.xlu0 120
    %513 = vperm.xlu0 %512, %v114
    %v514 = vpop.permute.xlu0 %513
    %517 = vset.pattern.permute.xlu0 120
    %518 = vperm.xlu0 %517, %v115
    %v519 = vpop.permute.xlu0 %518
    %522 = vset.pattern.permute.xlu0 120
    %523 = vperm.xlu0 %522, %v116
    %v524 = vpop.permute.xlu0 %523
    %v526 = vadd.f32 %v478, %v489
    %v527 = vadd.f32 %v479, %v494
    %v528 = vadd.f32 %v480, %v499
    %v529 = vadd.f32 %v481, %v504
    %v530 = vadd.f32 %v482, %v509
    %v531 = vadd.f32 %v483, %v514
    %v532 = vadd.f32 %v484, %v519
    %v533 = vadd.f32 %v485, %v524
    %v534 = vmul.f32 %v526, 1.442695
    %v535 = vpow.pop %v534
    %v536 = vmul.f32 %v527, 1.442695
    %v537 = vpow.pop %v536
    %v538 = vmul.f32 %v528, 1.442695
    %v539 = vpow.pop %v538
    %v540 = vmul.f32 %v529, 1.442695
    %v541 = vpow.pop %v540
    %v542 = vmul.f32 %v530, 1.442695
    %v543 = vpow.pop %v542
    %v544 = vmul.f32 %v531, 1.442695
    %v545 = vpow.pop %v544
    %v546 = vmul.f32 %v532, 1.442695
    %v547 = vpow.pop %v546
    %v548 = vmul.f32 %v533, 1.442695
    %v549 = vpow.pop %v548
    %550 = vmatprep.subr.mxu0 0.0
    %551 = vmatpush1.msra.mxu0 %v193
    %552 = vmatprep.subr.mxu0 0.0
    %553 = vmatpush1.msra.mxu0 0.0
    %554 = vmatprep.subr.mxu0 0.0
    %555 = vmatpush1.msra.mxu0 0.0
    %556 = vmatprep.subr.mxu0 0.0
    %557 = vmatpush1.msra.mxu0 0.0
    %558 = vmatprep.subr.mxu0 0.0
    %559 = vmatpush1.msra.mxu0 0.0
    %560 = vmatprep.subr.mxu0 0.0
    %561 = vmatpush1.msra.mxu0 0.0
    %562 = vmatprep.subr.mxu0 0.0
    %563 = vmatpush1.msra.mxu0 0.0
    %564 = vmatprep.subr.mxu0 0.0
    %565 = vmatpush1.msra.mxu0 0.0
    %566 = vmatprep.subr.mxu0 0.0
    %567 = vmatpush1.msra.mxu0 0.0
    %568 = vmatprep.subr.mxu0 0.0
    %569 = vmatpush1.msra.mxu0 0.0
    %570 = vmatprep.subr.mxu0 0.0
    %571 = vmatpush1.msra.mxu0 0.0
    %572 = vmatprep.subr.mxu0 0.0
    %573 = vmatpush1.msra.mxu0 0.0
    %574 = vmatprep.subr.mxu0 0.0
    %575 = vmatpush1.msra.mxu0 0.0
    %576 = vmatprep.subr.mxu0 0.0
    %577 = vmatpush1.msra.mxu0 0.0
    %578 = vmatprep.subr.mxu0 0.0
    %579 = vmatpush1.msra.mxu0 0.0
    %580 = vmatprep.subr.mxu0 0.0
    %581 = vmatpush1.msra.mxu0 0.0
    %582 = vmatprep.subr.mxu0 0.0
    %583 = vmatpush1.msra.mxu0 0.0
    %584 = vmatprep.subr.mxu0 0.0
    %585 = vmatpush1.msra.mxu0 0.0
    %586 = vmatprep.subr.mxu0 0.0
    %587 = vmatpush1.msra.mxu0 0.0
    %588 = vmatprep.subr.mxu0 0.0
    %589 = vmatpush1.msra.mxu0 0.0
    %590 = vmatprep.subr.mxu0 0.0
    %591 = vmatpush1.msra.mxu0 0.0
    %592 = vmatprep.subr.mxu0 0.0
    %593 = vmatpush1.msra.mxu0 0.0
    %594 = vmatprep.subr.mxu0 0.0
    %595 = vmatpush1.msra.mxu0 0.0
    %596 = vmatprep.subr.mxu0 0.0
    %597 = vmatpush1.msra.mxu0 0.0
    %598 = vmatprep.subr.mxu0 0.0
    %599 = vmatpush1.msra.mxu0 0.0
    %600 = vmatprep.subr.mxu0 0.0
    %601 = vmatpush1.msra.mxu0 0.0
    %602 = vmatprep.subr.mxu0 0.0
    %603 = vmatpush1.msra.mxu0 0.0
    %604 = vmatprep.subr.mxu0 0.0
    %605 = vmatpush1.msra.mxu0 0.0
    %606 = vmatprep.subr.mxu0 0.0
    %607 = vmatpush1.msra.mxu0 0.0
    %608 = vmatprep.subr.mxu0 0.0
    %609 = vmatpush1.msra.mxu0 0.0
    %610 = vmatprep.subr.mxu0 0.0
    %611 = vmatpush1.msra.mxu0 0.0
    %612 = vmatprep.subr.mxu0 0.0
    %613 = vmatpush1.msra.mxu0 0.0
    %614 = vmatprep.mubr.f32.mxu0 0.0
    %615 = vmatmul.mubr.f32.gmra.mrb[0].mxu0 %v202
    %v616 = vpop.f32.mrb[0].mxu0
    %v617 = vadd.f32 0.0, %v616
    %v618 = vpop.f32.mrb[0].mxu0
    %619 = vmatprep.mubr.f32.mxu0 0.0
    %620 = vmatmul.mubr.f32.gmra.mrb[0].mxu0 %v205
    %v621 = vpop.f32.mrb[0].mxu0
    %v622 = vadd.f32 0.0, %v621
    %v623 = vpop.f32.mrb[0].mxu0
    %624 = vmatprep.mubr.f32.mxu0 0.0
    %625 = vmatmul.mubr.f32.gmra.mrb[0].mxu0 %v208
    %v626 = vpop.f32.mrb[0].mxu0
    %v627 = vadd.f32 0.0, %v626
    %v628 = vpop.f32.mrb[0].mxu0
    %629 = vmatprep.mubr.f32.mxu0 0.0
    %630 = vmatmul.mubr.f32.gmra.mrb[0].mxu0 %v211
    %v631 = vpop.f32.mrb[0].mxu0
    %v632 = vadd.f32 0.0, %v631
    %v633 = vpop.f32.mrb[0].mxu0
    %634 = vmatprep.mubr.f32.mxu0 0.0
    %635 = vmatmul.mubr.f32.gmra.mrb[0].mxu0 %v214
    %v636 = vpop.f32.mrb[0].mxu0
    %v637 = vadd.f32 0.0, %v636
    %v638 = vpop.f32.mrb[0].mxu0
    %639 = vmatprep.mubr.f32.mxu0 0.0
    %640 = vmatmul.mubr.f32.gmra.mrb[0].mxu0 %v217
    %v641 = vpop.f32.mrb[0].mxu0
    %v642 = vadd.f32 0.0, %v641
    %v643 = vpop.f32.mrb[0].mxu0
    %644 = vmatprep.mubr.f32.mxu0 0.0
    %645 = vmatmul.mubr.f32.gmra.mrb[0].mxu0 %v220
    %v646 = vpop.f32.mrb[0].mxu0
    %v647 = vadd.f32 0.0, %v646
    %v648 = vpop.f32.mrb[0].mxu0
    %649 = vmatprep.mubr.f32.mxu0 0.0
    %650 = vmatmul.mubr.f32.gmra.mrb[0].mxu0 %v223
    %v651 = vpop.f32.mrb[0].mxu0
    %v652 = vadd.f32 0.0, %v651
    %v653 = vpop.f32.mrb[0].mxu0
    %654 = vdwg.mxu0
    %vm655 = vcmask 31744
    %v657 = vsel %vm655, %v535, 0
    %v660 = vsel %vm655, %v537, 0
    %v663 = vsel %vm655, %v539, 0
    %v666 = vsel %vm655, %v541, 0
    %v669 = vsel %vm655, %v543, 0
    %v672 = vsel %vm655, %v545, 0
    %v675 = vsel %vm655, %v547, 0
    %v678 = vsel %vm655, %v549, 0
    %vm680 = vcmask 1043456
    %v682 = vsel %vm680, %v108, 0
    %684 = vmatprep.subr.mxu0 0.0
    %685 = vmatpush1.msra.mxu0 %v682
    %686 = vmatprep.subr.mxu0 0.0
    %687 = vmatpush1.msra.mxu0 0.0
    %688 = vmatprep.subr.mxu0 0.0
    %689 = vmatpush1.msra.mxu0 0.0
    %690 = vmatprep.subr.mxu0 0.0
    %691 = vmatpush1.msra.mxu0 0.0
    %692 = vmatprep.subr.mxu0 0.0
    %693 = vmatpush1.msra.mxu0 0.0
    %694 = vmatprep.subr.mxu0 0.0
    %695 = vmatpush1.msra.mxu0 0.0
    %696 = vmatprep.subr.mxu0 0.0
    %697 = vmatpush1.msra.mxu0 0.0
    %698 = vmatprep.subr.mxu0 0.0
    %699 = vmatpush1.msra.mxu0 0.0
    %700 = vmatprep.subr.mxu0 0.0
    %701 = vmatpush1.msra.mxu0 0.0
    %702 = vmatprep.subr.mxu0 0.0
    %703 = vmatpush1.msra.mxu0 0.0
    %704 = vmatprep.subr.mxu0 0.0
    %705 = vmatpush1.msra.mxu0 0.0
    %706 = vmatprep.subr.mxu0 0.0
    %707 = vmatpush1.msra.mxu0 0.0
    %708 = vmatprep.subr.mxu0 0.0
    %709 = vmatpush1.msra.mxu0 0.0
    %710 = vmatprep.subr.mxu0 0.0
    %711 = vmatpush1.msra.mxu0 0.0
    %712 = vmatprep.subr.mxu0 0.0
    %713 = vmatpush1.msra.mxu0 0.0
    %714 = vmatprep.subr.mxu0 0.0
    %715 = vmatpush1.msra.mxu0 0.0
    %716 = vmatprep.subr.mxu0 0.0
    %717 = vmatpush1.msra.mxu0 0.0
    %718 = vmatprep.subr.mxu0 0.0
    %719 = vmatpush1.msra.mxu0 0.0
    %720 = vmatprep.subr.mxu0 0.0
    %721 = vmatpush1.msra.mxu0 0.0
    %722 = vmatprep.subr.mxu0 0.0
    %723 = vmatpush1.msra.mxu0 0.0
    %724 = vmatprep.subr.mxu0 0.0
    %725 = vmatpush1.msra.mxu0 0.0
    %726 = vmatprep.subr.mxu0 0.0
    %727 = vmatpush1.msra.mxu0 0.0
    %728 = vmatprep.subr.mxu0 0.0
    %729 = vmatpush1.msra.mxu0 0.0
    %730 = vmatprep.subr.mxu0 0.0
    %731 = vmatpush1.msra.mxu0 0.0
    %732 = vmatprep.subr.mxu0 0.0
    %733 = vmatpush1.msra.mxu0 0.0
    %734 = vmatprep.subr.mxu0 0.0
    %735 = vmatpush1.msra.mxu0 0.0
    %736 = vmatprep.subr.mxu0 0.0
    %737 = vmatpush1.msra.mxu0 0.0
    %738 = vmatprep.subr.mxu0 0.0
    %739 = vmatpush1.msra.mxu0 0.0
    %740 = vmatprep.subr.mxu0 0.0
    %741 = vmatpush1.msra.mxu0 0.0
    %742 = vmatprep.subr.mxu0 0.0
    %743 = vmatpush1.msra.mxu0 0.0
    %744 = vmatprep.subr.mxu0 0.0
    %745 = vmatpush1.msra.mxu0 0.0
    %746 = vmatprep.subr.mxu0 0.0
    %747 = vmatpush1.msra.mxu0 0.0
    %748 = vmatprep.mubr.f32.mxu0 0.0
    %749 = vmatmul.mubr.f32.gmra.mrb[0].mxu0 %v657
    %v750 = vpop.f32.mrb[0].mxu0
    %v751 = vadd.f32 0.0, %v750
    %v752 = vpop.f32.mrb[0].mxu0
    %753 = vmatprep.mubr.f32.mxu0 0.0
    %754 = vmatmul.mubr.f32.gmra.mrb[0].mxu0 %v660
    %v755 = vpop.f32.mrb[0].mxu0
    %v756 = vadd.f32 0.0, %v755
    %v757 = vpop.f32.mrb[0].mxu0
    %758 = vmatprep.mubr.f32.mxu0 0.0
    %759 = vmatmul.mubr.f32.gmra.mrb[0].mxu0 %v663
    %v760 = vpop.f32.mrb[0].mxu0
    %v761 = vadd.f32 0.0, %v760
    %v762 = vpop.f32.mrb[0].mxu0
    %763 = vmatprep.mubr.f32.mxu0 0.0
    %764 = vmatmul.mubr.f32.gmra.mrb[0].mxu0 %v666
    %v765 = vpop.f32.mrb[0].mxu0
    %v766 = vadd.f32 0.0, %v765
    %v767 = vpop.f32.mrb[0].mxu0
    %768 = vmatprep.mubr.f32.mxu0 0.0
    %769 = vmatmul.mubr.f32.gmra.mrb[0].mxu0 %v669
    %v770 = vpop.f32.mrb[0].mxu0
    %v771 = vadd.f32 0.0, %v770
    %v772 = vpop.f32.mrb[0].mxu0
    %773 = vmatprep.mubr.f32.mxu0 0.0
    %774 = vmatmul.mubr.f32.gmra.mrb[0].mxu0 %v672
    %v775 = vpop.f32.mrb[0].mxu0
    %v776 = vadd.f32 0.0, %v775
    %v777 = vpop.f32.mrb[0].mxu0
    %778 = vmatprep.mubr.f32.mxu0 0.0
    %779 = vmatmul.mubr.f32.gmra.mrb[0].mxu0 %v675
    %v780 = vpop.f32.mrb[0].mxu0
    %v781 = vadd.f32 0.0, %v780
    %v782 = vpop.f32.mrb[0].mxu0
    %783 = vmatprep.mubr.f32.mxu0 0.0
    %784 = vmatmul.mubr.f32.gmra.mrb[0].mxu0 %v678
    %v785 = vpop.f32.mrb[0].mxu0
    %v786 = vadd.f32 0.0, %v785
    %v787 = vpop.f32.mrb[0].mxu0
    %788 = vdwg.mxu0
    %v789 = vmul.f32 %v751, %v617
    %v790 = vmul.f32 %v756, %v622
    %v791 = vmul.f32 %v761, %v627
    %v792 = vmul.f32 %v766, %v632
    %v793 = vmul.f32 %v771, %v637
    %v794 = vmul.f32 %v776, %v642
    %v795 = vmul.f32 %v781, %v647
    %v796 = vmul.f32 %v786, %v652
    %vm797 = vcmask 523264
    %v799 = vsel %vm797, %v104, 0
    %801 = vmatprep.subr.mxu0 0.0
    %802 = vmatpush1.msra.mxu0 %v789
    %803 = vmatprep.subr.mxu0 0.0
    %804 = vmatpush1.msra.mxu0 %v790
    %805 = vmatprep.subr.mxu0 0.0
    %806 = vmatpush1.msra.mxu0 %v791
    %807 = vmatprep.subr.mxu0 0.0
    %808 = vmatpush1.msra.mxu0 %v792
    %809 = vmatprep.subr.mxu0 0.0
    %810 = vmatpush1.msra.mxu0 %v793
    %811 = vmatprep.subr.mxu0 0.0
    %812 = vmatpush1.msra.mxu0 %v794
    %813 = vmatprep.subr.mxu0 0.0
    %814 = vmatpush1.msra.mxu0 %v795
    %815 = vmatprep.subr.mxu0 0.0
    %816 = vmatpush1.msra.mxu0 %v796
    %817 = vmatprep.subr.mxu0 0.0
    %818 = vmatpush1.msra.mxu0 0.0
    %819 = vmatprep.subr.mxu0 0.0
    %820 = vmatpush1.msra.mxu0 0.0
    %821 = vmatprep.subr.mxu0 0.0
    %822 = vmatpush1.msra.mxu0 0.0
    %823 = vmatprep.subr.mxu0 0.0
    %824 = vmatpush1.msra.mxu0 0.0
    %825 = vmatprep.subr.mxu0 0.0
    %826 = vmatpush1.msra.mxu0 0.0
    %827 = vmatprep.subr.mxu0 0.0
    %828 = vmatpush1.msra.mxu0 0.0
    %829 = vmatprep.subr.mxu0 0.0
    %830 = vmatpush1.msra.mxu0 0.0
    %831 = vmatprep.subr.mxu0 0.0
    %832 = vmatpush1.msra.mxu0 0.0
    %833 = vmatprep.subr.mxu0 0.0
    %834 = vmatpush1.msra.mxu0 0.0
    %835 = vmatprep.subr.mxu0 0.0
    %836 = vmatpush1.msra.mxu0 0.0
    %837 = vmatprep.subr.mxu0 0.0
    %838 = vmatpush1.msra.mxu0 0.0
    %839 = vmatprep.subr.mxu0 0.0
    %840 = vmatpush1.msra.mxu0 0.0
    %841 = vmatprep.subr.mxu0 0.0
    %842 = vmatpush1.msra.mxu0 0.0
    %843 = vmatprep.subr.mxu0 0.0
    %844 = vmatpush1.msra.mxu0 0.0
    %845 = vmatprep.subr.mxu0 0.0
    %846 = vmatpush1.msra.mxu0 0.0
    %847 = vmatprep.subr.mxu0 0.0
    %848 = vmatpush1.msra.mxu0 0.0
    %849 = vmatprep.subr.mxu0 0.0
    %850 = vmatpush1.msra.mxu0 0.0
    %851 = vmatprep.subr.mxu0 0.0
    %852 = vmatpush1.msra.mxu0 0.0
    %853 = vmatprep.subr.mxu0 0.0
    %854 = vmatpush1.msra.mxu0 0.0
    %855 = vmatprep.subr.mxu0 0.0
    %856 = vmatpush1.msra.mxu0 0.0
    %857 = vmatprep.subr.mxu0 0.0
    %858 = vmatpush1.msra.mxu0 0.0
    %859 = vmatprep.subr.mxu0 0.0
    %860 = vmatpush1.msra.mxu0 0.0
    %861 = vmatprep.subr.mxu0 0.0
    %862 = vmatpush1.msra.mxu0 0.0
    %863 = vmatprep.subr.mxu0 0.0
    %864 = vmatpush1.msra.mxu0 0.0
    %865 = vmatprep.mubr.f32.mxu0 0.0
    %866 = vmatmul.mubr.f32.gmra.mrb[0].mxu0 %v799
    %v867 = vpop.f32.mrb[0].mxu0
    %v868 = vadd.f32 0.0, %v867
    %v869 = vpop.f32.mrb[0].mxu0
    %870 = vdwg.mxu0
    %871 = vmatprep.subr.mxu0 0.0
    %872 = vmatpush1.msra.mxu0 %v535
    %873 = vmatprep.subr.mxu0 0.0
    %874 = vmatpush1.msra.mxu0 %v537
    %875 = vmatprep.subr.mxu0 0.0
    %876 = vmatpush1.msra.mxu0 %v539
    %877 = vmatprep.subr.mxu0 0.0
    %878 = vmatpush1.msra.mxu0 %v541
    %879 = vmatprep.subr.mxu0 0.0
    %880 = vmatpush1.msra.mxu0 %v543
    %881 = vmatprep.subr.mxu0 0.0
    %882 = vmatpush1.msra.mxu0 %v545
    %883 = vmatprep.subr.mxu0 0.0
    %884 = vmatpush1.msra.mxu0 %v547
    %885 = vmatprep.subr.mxu0 0.0
    %886 = vmatpush1.msra.mxu0 %v549
    %887 = vmatprep.subr.mxu0 0.0
    %888 = vmatpush1.msra.mxu0 0.0
    %889 = vmatprep.subr.mxu0 0.0
    %890 = vmatpush1.msra.mxu0 0.0
    %891 = vmatprep.subr.mxu0 0.0
    %892 = vmatpush1.msra.mxu0 0.0
    %893 = vmatprep.subr.mxu0 0.0
    %894 = vmatpush1.msra.mxu0 0.0
    %895 = vmatprep.subr.mxu0 0.0
    %896 = vmatpush1.msra.mxu0 0.0
    %897 = vmatprep.subr.mxu0 0.0
    %898 = vmatpush1.msra.mxu0 0.0
    %899 = vmatprep.subr.mxu0 0.0
    %900 = vmatpush1.msra.mxu0 0.0
    %901 = vmatprep.subr.mxu0 0.0
    %902 = vmatpush1.msra.mxu0 0.0
    %903 = vmatprep.subr.mxu0 0.0
    %904 = vmatpush1.msra.mxu0 0.0
    %905 = vmatprep.subr.mxu0 0.0
    %906 = vmatpush1.msra.mxu0 0.0
    %907 = vmatprep.subr.mxu0 0.0
    %908 = vmatpush1.msra.mxu0 0.0
    %909 = vmatprep.subr.mxu0 0.0
    %910 = vmatpush1.msra.mxu0 0.0
    %911 = vmatprep.subr.mxu0 0.0
    %912 = vmatpush1.msra.mxu0 0.0
    %913 = vmatprep.subr.mxu0 0.0
    %914 = vmatpush1.msra.mxu0 0.0
    %915 = vmatprep.subr.mxu0 0.0
    %916 = vmatpush1.msra.mxu0 0.0
    %917 = vmatprep.subr.mxu0 0.0
    %918 = vmatpush1.msra.mxu0 0.0
    %919 = vmatprep.subr.mxu0 0.0
    %920 = vmatpush1.msra.mxu0 0.0
    %921 = vmatprep.subr.mxu0 0.0
    %922 = vmatpush1.msra.mxu0 0.0
    %923 = vmatprep.subr.mxu0 0.0
    %924 = vmatpush1.msra.mxu0 0.0
    %925 = vmatprep.subr.mxu0 0.0
    %926 = vmatpush1.msra.mxu0 0.0
    %927 = vmatprep.subr.mxu0 0.0
    %928 = vmatpush1.msra.mxu0 0.0
    %929 = vmatprep.subr.mxu0 0.0
    %930 = vmatpush1.msra.mxu0 0.0
    %931 = vmatprep.subr.mxu0 0.0
    %932 = vmatpush1.msra.mxu0 0.0
    %933 = vmatprep.subr.mxu0 0.0
    %934 = vmatpush1.msra.mxu0 0.0
    %935 = vmatprep.mubr.f32.mxu0 0.0
    %936 = vmatmul.mubr.f32.gmra.mrb[0].mxu0 %v799
    %v937 = vpop.f32.mrb[0].mxu0
    %v938 = vadd.f32 0.0, %v937
    %v939 = vpop.f32.mrb[0].mxu0
    %940 = vdwg.mxu0
    %v941 = vrcp.pop %v938
    %v943 = vsel %vm655, %v941, 0
    %945 = vmatprep.subr.mxu0 0.0
    %946 = vmatpush1.msra.mxu0 %v682
    %947 = vmatprep.subr.mxu0 0.0
    %948 = vmatpush1.msra.mxu0 0.0
    %949 = vmatprep.subr.mxu0 0.0
    %950 = vmatpush1.msra.mxu0 0.0
    %951 = vmatprep.subr.mxu0 0.0
    %952 = vmatpush1.msra.mxu0 0.0
    %953 = vmatprep.subr.mxu0 0.0
    %954 = vmatpush1.msra.mxu0 0.0
    %955 = vmatprep.subr.mxu0 0.0
    %956 = vmatpush1.msra.mxu0 0.0
    %957 = vmatprep.subr.mxu0 0.0
    %958 = vmatpush1.msra.mxu0 0.0
    %959 = vmatprep.subr.mxu0 0.0
    %960 = vmatpush1.msra.mxu0 0.0
    %961 = vmatprep.subr.mxu0 0.0
    %962 = vmatpush1.msra.mxu0 0.0
    %963 = vmatprep.subr.mxu0 0.0
    %964 = vmatpush1.msra.mxu0 0.0
    %965 = vmatprep.subr.mxu0 0.0
    %966 = vmatpush1.msra.mxu0 0.0
    %967 = vmatprep.subr.mxu0 0.0
    %968 = vmatpush1.msra.mxu0 0.0
    %969 = vmatprep.subr.mxu0 0.0
    %970 = vmatpush1.msra.mxu0 0.0
    %971 = vmatprep.subr.mxu0 0.0
    %972 = vmatpush1.msra.mxu0 0.0
    %973 = vmatprep.subr.mxu0 0.0
    %974 = vmatpush1.msra.mxu0 0.0
    %975 = vmatprep.subr.mxu0 0.0
    %976 = vmatpush1.msra.mxu0 0.0
    %977 = vmatprep.subr.mxu0 0.0
    %978 = vmatpush1.msra.mxu0 0.0
    %979 = vmatprep.subr.mxu0 0.0
    %980 = vmatpush1.msra.mxu0 0.0
    %981 = vmatprep.subr.mxu0 0.0
    %982 = vmatpush1.msra.mxu0 0.0
    %983 = vmatprep.subr.mxu0 0.0
    %984 = vmatpush1.msra.mxu0 0.0
    %985 = vmatprep.subr.mxu0 0.0
    %986 = vmatpush1.msra.mxu0 0.0
    %987 = vmatprep.subr.mxu0 0.0
    %988 = vmatpush1.msra.mxu0 0.0
    %989 = vmatprep.subr.mxu0 0.0
    %990 = vmatpush1.msra.mxu0 0.0
    %991 = vmatprep.subr.mxu0 0.0
    %992 = vmatpush1.msra.mxu0 0.0
    %993 = vmatprep.subr.mxu0 0.0
    %994 = vmatpush1.msra.mxu0 0.0
    %995 = vmatprep.subr.mxu0 0.0
    %996 = vmatpush1.msra.mxu0 0.0
    %997 = vmatprep.subr.mxu0 0.0
    %998 = vmatpush1.msra.mxu0 0.0
    %999 = vmatprep.subr.mxu0 0.0
    %1000 = vmatpush1.msra.mxu0 0.0
    %1001 = vmatprep.subr.mxu0 0.0
    %1002 = vmatpush1.msra.mxu0 0.0
    %1003 = vmatprep.subr.mxu0 0.0
    %1004 = vmatpush1.msra.mxu0 0.0
    %1005 = vmatprep.subr.mxu0 0.0
    %1006 = vmatpush1.msra.mxu0 0.0
    %1007 = vmatprep.subr.mxu0 0.0
    %1008 = vmatpush1.msra.mxu0 0.0
    %1009 = vmatprep.mubr.f32.mxu0 0.0
    %1010 = vmatmul.mubr.f32.gmra.mrb[0].mxu0 %v943
    %v1011 = vpop.f32.mrb[0].mxu0
    %v1012 = vadd.f32 0.0, %v1011
    %v1013 = vpop.f32.mrb[0].mxu0
    %1014 = vdwg.mxu0
    %v1015 = vmul.f32 %v868, %v1012
    %v1016 = vld [vmem:[#allocation2 + $0x44] sm:$0x1]
    %v1017 = vlaneseq
    %v1018 = vshrl.u32 %v1017, 7
    %v1019 = vsub.s32 0, %v1018
    %v1020 = vrot.slane %v1016, %v1019
    %v1021 = vadd.f32 %v1015, %v1020
    %v1022 = vmax.f32 %v1021, 0.0
    %v1023 = vld [vmem:[#allocation2 + $0x45] sm:$0x1]
    %v1024 = vlaneseq
    %v1025 = vshrl.u32 %v1024, 7
    %v1026 = vsub.s32 0, %v1025
    %v1027 = vrot.slane %v1023, %v1026
    %v1029 = vsel %vm797, %v1022, 0
    %1031 = vmatprep.subr.mxu0 0.0
    %1032 = vmatpush1.msra.mxu0 %v109
    %1033 = vmatprep.subr.mxu0 0.0
    %1034 = vmatpush1.msra.mxu0 %v110
    %1035 = vmatprep.subr.mxu0 0.0
    %1036 = vmatpush1.msra.mxu0 %v111
    %1037 = vmatprep.subr.mxu0 0.0
    %1038 = vmatpush1.msra.mxu0 %v112
    %1039 = vmatprep.subr.mxu0 0.0
    %1040 = vmatpush1.msra.mxu0 %v113
    %1041 = vmatprep.subr.mxu0 0.0
    %1042 = vmatpush1.msra.mxu0 %v114
    %1043 = vmatprep.subr.mxu0 0.0
    %1044 = vmatpush1.msra.mxu0 %v115
    %1045 = vmatprep.subr.mxu0 0.0
    %1046 = vmatpush1.msra.mxu0 %v116
    %1047 = vmatprep.subr.mxu0 0.0
    %1048 = vmatpush1.msra.mxu0 0.0
    %1049 = vmatprep.subr.mxu0 0.0
    %1050 = vmatpush1.msra.mxu0 0.0
    %1051 = vmatprep.subr.mxu0 0.0
    %1052 = vmatpush1.msra.mxu0 0.0
    %1053 = vmatprep.subr.mxu0 0.0
    %1054 = vmatpush1.msra.mxu0 0.0
    %1055 = vmatprep.subr.mxu0 0.0
    %1056 = vmatpush1.msra.mxu0 0.0
    %1057 = vmatprep.subr.mxu0 0.0
    %1058 = vmatpush1.msra.mxu0 0.0
    %1059 = vmatprep.subr.mxu0 0.0
    %1060 = vmatpush1.msra.mxu0 0.0
    %1061 = vmatprep.subr.mxu0 0.0
    %1062 = vmatpush1.msra.mxu0 0.0
    %1063 = vmatprep.subr.mxu0 0.0
    %1064 = vmatpush1.msra.mxu0 0.0
    %1065 = vmatprep.subr.mxu0 0.0
    %1066 = vmatpush1.msra.mxu0 0.0
    %1067 = vmatprep.subr.mxu0 0.0
    %1068 = vmatpush1.msra.mxu0 0.0
    %1069 = vmatprep.subr.mxu0 0.0
    %1070 = vmatpush1.msra.mxu0 0.0
    %1071 = vmatprep.subr.mxu0 0.0
    %1072 = vmatpush1.msra.mxu0 0.0
    %1073 = vmatprep.subr.mxu0 0.0
    %1074 = vmatpush1.msra.mxu0 0.0
    %1075 = vmatprep.subr.mxu0 0.0
    %1076 = vmatpush1.msra.mxu0 0.0
    %1077 = vmatprep.subr.mxu0 0.0
    %1078 = vmatpush1.msra.mxu0 0.0
    %1079 = vmatprep.subr.mxu0 0.0
    %1080 = vmatpush1.msra.mxu0 0.0
    %1081 = vmatprep.subr.mxu0 0.0
    %1082 = vmatpush1.msra.mxu0 0.0
    %1083 = vmatprep.subr.mxu0 0.0
    %1084 = vmatpush1.msra.mxu0 0.0
    %1085 = vmatprep.subr.mxu0 0.0
    %1086 = vmatpush1.msra.mxu0 0.0
    %1087 = vmatprep.subr.mxu0 0.0
    %1088 = vmatpush1.msra.mxu0 0.0
    %1089 = vmatprep.subr.mxu0 0.0
    %1090 = vmatpush1.msra.mxu0 0.0
    %1091 = vmatprep.subr.mxu0 0.0
    %1092 = vmatpush1.msra.mxu0 0.0
    %1093 = vmatprep.subr.mxu0 0.0
    %1094 = vmatpush1.msra.mxu0 0.0
    %1095 = vmatprep.mubr.f32.mxu0 0.0
    %1096 = vmatmul.mubr.f32.gmra.mrb[0].mxu0 %v1029
    %v1097 = vpop.f32.mrb[0].mxu0
    %v1098 = vadd.f32 %v1027, %v1097
    %v1099 = vpop.f32.mrb[0].mxu0
    %1100 = vdwg.mxu0
    %1101 = vmatprep.subr.mxu0 0.0
    %1102 = vmatpush1.msra.mxu0 %v1098
    %1103 = vmatprep.subr.mxu0 0.0
    %1104 = vmatpush1.msra.mxu0 0.0
    %1105 = vmatprep.subr.mxu0 0.0
    %1106 = vmatpush1.msra.mxu0 0.0
    %1107 = vmatprep.subr.mxu0 0.0
    %1108 = vmatpush1.msra.mxu0 0.0
    %1109 = vmatprep.subr.mxu0 0.0
    %1110 = vmatpush1.msra.mxu0 0.0
    %1111 = vmatprep.subr.mxu0 0.0
    %1112 = vmatpush1.msra.mxu0 0.0
    %1113 = vmatprep.subr.mxu0 0.0
    %1114 = vmatpush1.msra.mxu0 0.0
    %1115 = vmatprep.subr.mxu0 0.0
    %1116 = vmatpush1.msra.mxu0 0.0
    %1117 = vmatprep.subr.mxu0 0.0
    %1118 = vmatpush1.msra.mxu0 0.0
    %1119 = vmatprep.subr.mxu0 0.0
    %1120 = vmatpush1.msra.mxu0 0.0
    %1121 = vmatprep.subr.mxu0 0.0
    %1122 = vmatpush1.msra.mxu0 0.0
    %1123 = vmatprep.subr.mxu0 0.0
    %1124 = vmatpush1.msra.mxu0 0.0
    %1125 = vmatprep.subr.mxu0 0.0
    %1126 = vmatpush1.msra.mxu0 0.0
    %1127 = vmatprep.subr.mxu0 0.0
    %1128 = vmatpush1.msra.mxu0 0.0
    %1129 = vmatprep.subr.mxu0 0.0
    %1130 = vmatpush1.msra.mxu0 0.0
    %1131 = vmatprep.subr.mxu0 0.0
    %1132 = vmatpush1.msra.mxu0 0.0
    %1133 = vmatprep.subr.mxu0 0.0
    %1134 = vmatpush1.msra.mxu0 0.0
    %1135 = vmatprep.subr.mxu0 0.0
    %1136 = vmatpush1.msra.mxu0 0.0
    %1137 = vmatprep.subr.mxu0 0.0
    %1138 = vmatpush1.msra.mxu0 0.0
    %1139 = vmatprep.subr.mxu0 0.0
    %1140 = vmatpush1.msra.mxu0 0.0
    %1141 = vmatprep.subr.mxu0 0.0
    %1142 = vmatpush1.msra.mxu0 0.0
    %1143 = vmatprep.subr.mxu0 0.0
    %1144 = vmatpush1.msra.mxu0 0.0
    %1145 = vmatprep.subr.mxu0 0.0
    %1146 = vmatpush1.msra.mxu0 0.0
    %1147 = vmatprep.subr.mxu0 0.0
    %1148 = vmatpush1.msra.mxu0 0.0
    %1149 = vmatprep.subr.mxu0 0.0
    %1150 = vmatpush1.msra.mxu0 0.0
    %1151 = vmatprep.subr.mxu0 0.0
    %1152 = vmatpush1.msra.mxu0 0.0
    %1153 = vmatprep.subr.mxu0 0.0
    %1154 = vmatpush1.msra.mxu0 0.0
    %1155 = vmatprep.subr.mxu0 0.0
    %1156 = vmatpush1.msra.mxu0 0.0
    %1157 = vmatprep.subr.mxu0 0.0
    %1158 = vmatpush1.msra.mxu0 0.0
    %1159 = vmatprep.subr.mxu0 0.0
    %1160 = vmatpush1.msra.mxu0 0.0
    %1161 = vmatprep.subr.mxu0 0.0
    %1162 = vmatpush1.msra.mxu0 0.0
    %1163 = vmatprep.subr.mxu0 0.0
    %1164 = vmatpush1.msra.mxu0 0.0
    %1165 = vmatprep.mubr.f32.mxu0 0.0
    %1166 = vmatmul.mubr.f32.gmra.mrb[0].mxu0 %v202
    %v1167 = vpop.f32.mrb[0].mxu0
    %v1168 = vadd.f32 0.0, %v1167
    %v1169 = vpop.f32.mrb[0].mxu0
    %1170 = vmatprep.mubr.f32.mxu0 0.0
    %1171 = vmatmul.mubr.f32.gmra.mrb[0].mxu0 %v205
    %v1172 = vpop.f32.mrb[0].mxu0
    %v1173 = vadd.f32 0.0, %v1172
    %v1174 = vpop.f32.mrb[0].mxu0
    %1175 = vmatprep.mubr.f32.mxu0 0.0
    %1176 = vmatmul.mubr.f32.gmra.mrb[0].mxu0 %v208
    %v1177 = vpop.f32.mrb[0].mxu0
    %v1178 = vadd.f32 0.0, %v1177
    %v1179 = vpop.f32.mrb[0].mxu0
    %1180 = vmatprep.mubr.f32.mxu0 0.0
    %1181 = vmatmul.mubr.f32.gmra.mrb[0].mxu0 %v211
    %v1182 = vpop.f32.mrb[0].mxu0
    %v1183 = vadd.f32 0.0, %v1182
    %v1184 = vpop.f32.mrb[0].mxu0
    %1185 = vmatprep.mubr.f32.mxu0 0.0
    %1186 = vmatmul.mubr.f32.gmra.mrb[0].mxu0 %v214
    %v1187 = vpop.f32.mrb[0].mxu0
    %v1188 = vadd.f32 0.0, %v1187
    %v1189 = vpop.f32.mrb[0].mxu0
    %1190 = vmatprep.mubr.f32.mxu0 0.0
    %1191 = vmatmul.mubr.f32.gmra.mrb[0].mxu0 %v217
    %v1192 = vpop.f32.mrb[0].mxu0
    %v1193 = vadd.f32 0.0, %v1192
    %v1194 = vpop.f32.mrb[0].mxu0
    %1195 = vmatprep.mubr.f32.mxu0 0.0
    %1196 = vmatmul.mubr.f32.gmra.mrb[0].mxu0 %v220
    %v1197 = vpop.f32.mrb[0].mxu0
    %v1198 = vadd.f32 0.0, %v1197
    %v1199 = vpop.f32.mrb[0].mxu0
    %1200 = vmatprep.mubr.f32.mxu0 0.0
    %1201 = vmatmul.mubr.f32.gmra.mrb[0].mxu0 %v223
    %v1202 = vpop.f32.mrb[0].mxu0
    %v1203 = vadd.f32 0.0, %v1202
    %v1204 = vpop.f32.mrb[0].mxu0
    %1205 = vdwg.mxu0
    %1207 = vrot.lane.b32.xlu0 %v1098, 96
    %v1208 = vpop.permute.xlu0 %1207
    %1210 = vmatprep.subr.mxu0 0.0
    %1211 = vmatpush1.msra.mxu0 %v1208
    %1212 = vmatprep.subr.mxu0 0.0
    %1213 = vmatpush1.msra.mxu0 0.0
    %1214 = vmatprep.subr.mxu0 0.0
    %1215 = vmatpush1.msra.mxu0 0.0
    %1216 = vmatprep.subr.mxu0 0.0
    %1217 = vmatpush1.msra.mxu0 0.0
    %1218 = vmatprep.subr.mxu0 0.0
    %1219 = vmatpush1.msra.mxu0 0.0
    %1220 = vmatprep.subr.mxu0 0.0
    %1221 = vmatpush1.msra.mxu0 0.0
    %1222 = vmatprep.subr.mxu0 0.0
    %1223 = vmatpush1.msra.mxu0 0.0
    %1224 = vmatprep.subr.mxu0 0.0
    %1225 = vmatpush1.msra.mxu0 0.0
    %1226 = vmatprep.subr.mxu0 0.0
    %1227 = vmatpush1.msra.mxu0 0.0
    %1228 = vmatprep.subr.mxu0 0.0
    %1229 = vmatpush1.msra.mxu0 0.0
    %1230 = vmatprep.subr.mxu0 0.0
    %1231 = vmatpush1.msra.mxu0 0.0
    %1232 = vmatprep.subr.mxu0 0.0
    %1233 = vmatpush1.msra.mxu0 0.0
    %1234 = vmatprep.subr.mxu0 0.0
    %1235 = vmatpush1.msra.mxu0 0.0
    %1236 = vmatprep.subr.mxu0 0.0
    %1237 = vmatpush1.msra.mxu0 0.0
    %1238 = vmatprep.subr.mxu0 0.0
    %1239 = vmatpush1.msra.mxu0 0.0
    %1240 = vmatprep.subr.mxu0 0.0
    %1241 = vmatpush1.msra.mxu0 0.0
    %1242 = vmatprep.subr.mxu0 0.0
    %1243 = vmatpush1.msra.mxu0 0.0
    %1244 = vmatprep.subr.mxu0 0.0
    %1245 = vmatpush1.msra.mxu0 0.0
    %1246 = vmatprep.subr.mxu0 0.0
    %1247 = vmatpush1.msra.mxu0 0.0
    %1248 = vmatprep.subr.mxu0 0.0
    %1249 = vmatpush1.msra.mxu0 0.0
    %1250 = vmatprep.subr.mxu0 0.0
    %1251 = vmatpush1.msra.mxu0 0.0
    %1252 = vmatprep.subr.mxu0 0.0
    %1253 = vmatpush1.msra.mxu0 0.0
    %1254 = vmatprep.subr.mxu0 0.0
    %1255 = vmatpush1.msra.mxu0 0.0
    %1256 = vmatprep.subr.mxu0 0.0
    %1257 = vmatpush1.msra.mxu0 0.0
    %1258 = vmatprep.subr.mxu0 0.0
    %1259 = vmatpush1.msra.mxu0 0.0
    %1260 = vmatprep.subr.mxu0 0.0
    %1261 = vmatpush1.msra.mxu0 0.0
    %1262 = vmatprep.subr.mxu0 0.0
    %1263 = vmatpush1.msra.mxu0 0.0
    %1264 = vmatprep.subr.mxu0 0.0
    %1265 = vmatpush1.msra.mxu0 0.0
    %1266 = vmatprep.subr.mxu0 0.0
    %1267 = vmatpush1.msra.mxu0 0.0
    %1268 = vmatprep.subr.mxu0 0.0
    %1269 = vmatpush1.msra.mxu0 0.0
    %1270 = vmatprep.subr.mxu0 0.0
    %1271 = vmatpush1.msra.mxu0 0.0
    %1272 = vmatprep.subr.mxu0 0.0
    %1273 = vmatpush1.msra.mxu0 0.0
    %1274 = vmatprep.mubr.f32.mxu0 0.0
    %1275 = vmatmul.mubr.f32.gmra.mrb[0].mxu0 %v334
    %v1276 = vpop.f32.mrb[0].mxu0
    %v1277 = vadd.f32 %v1168, %v1276
    %v1278 = vpop.f32.mrb[0].mxu0
    %1279 = vmatprep.mubr.f32.mxu0 0.0
    %1280 = vmatmul.mubr.f32.gmra.mrb[0].mxu0 %v337
    %v1281 = vpop.f32.mrb[0].mxu0
    %v1282 = vadd.f32 %v1173, %v1281
    %v1283 = vpop.f32.mrb[0].mxu0
    %1284 = vmatprep.mubr.f32.mxu0 0.0
    %1285 = vmatmul.mubr.f32.gmra.mrb[0].mxu0 %v340
    %v1286 = vpop.f32.mrb[0].mxu0
    %v1287 = vadd.f32 %v1178, %v1286
    %v1288 = vpop.f32.mrb[0].mxu0
    %1289 = vmatprep.mubr.f32.mxu0 0.0
    %1290 = vmatmul.mubr.f32.gmra.mrb[0].mxu0 %v343
    %v1291 = vpop.f32.mrb[0].mxu0
    %v1292 = vadd.f32 %v1183, %v1291
    %v1293 = vpop.f32.mrb[0].mxu0
    %1294 = vmatprep.mubr.f32.mxu0 0.0
    %1295 = vmatmul.mubr.f32.gmra.mrb[0].mxu0 %v346
    %v1296 = vpop.f32.mrb[0].mxu0
    %v1297 = vadd.f32 %v1188, %v1296
    %v1298 = vpop.f32.mrb[0].mxu0
    %1299 = vmatprep.mubr.f32.mxu0 0.0
    %1300 = vmatmul.mubr.f32.gmra.mrb[0].mxu0 %v349
    %v1301 = vpop.f32.mrb[0].mxu0
    %v1302 = vadd.f32 %v1193, %v1301
    %v1303 = vpop.f32.mrb[0].mxu0
    %1304 = vmatprep.mubr.f32.mxu0 0.0
    %1305 = vmatmul.mubr.f32.gmra.mrb[0].mxu0 %v352
    %v1306 = vpop.f32.mrb[0].mxu0
    %v1307 = vadd.f32 %v1198, %v1306
    %v1308 = vpop.f32.mrb[0].mxu0
    %1309 = vmatprep.mubr.f32.mxu0 0.0
    %1310 = vmatmul.mubr.f32.gmra.mrb[0].mxu0 %v355
    %v1311 = vpop.f32.mrb[0].mxu0
    %v1312 = vadd.f32 %v1203, %v1311
    %v1313 = vpop.f32.mrb[0].mxu0
    %1314 = vdwg.mxu0
    %vm1315 = vcmp.gt.f32.partialorder %v1277, 0.0
    %vm1316 = vcmp.gt.f32.partialorder %v1282, 0.0
    %vm1317 = vcmp.gt.f32.partialorder %v1287, 0.0
    %vm1318 = vcmp.gt.f32.partialorder %v1292, 0.0
    %vm1319 = vcmp.gt.f32.partialorder %v1297, 0.0
    %vm1320 = vcmp.gt.f32.partialorder %v1302, 0.0
    %vm1321 = vcmp.gt.f32.partialorder %v1307, 0.0
    %vm1322 = vcmp.gt.f32.partialorder %v1312, 0.0
    %v1323 = vmul.f32 %v1277, 0.2
    %v1324 = vmul.f32 %v1282, 0.2
    %v1325 = vmul.f32 %v1287, 0.2
    %v1326 = vmul.f32 %v1292, 0.2
    %v1327 = vmul.f32 %v1297, 0.2
    %v1328 = vmul.f32 %v1302, 0.2
    %v1329 = vmul.f32 %v1307, 0.2
    %v1330 = vmul.f32 %v1312, 0.2
    %v1331 = vsel %vm1315, %v1277, %v1323
    %v1332 = vsel %vm1316, %v1282, %v1324
    %v1333 = vsel %vm1317, %v1287, %v1325
    %v1334 = vsel %vm1318, %v1292, %v1326
    %v1335 = vsel %vm1319, %v1297, %v1327
    %v1336 = vsel %vm1320, %v1302, %v1328
    %v1337 = vsel %vm1321, %v1307, %v1329
    %v1338 = vsel %vm1322, %v1312, %v1330
    %v1339 = vld [vmem:[#allocation2] sm:$0xff]
    %v1340 = vld [vmem:[#allocation2 + $0x8] sm:$0xff]
    %v1341 = vld [vmem:[#allocation2 + $0x10] sm:$0xff]
    %v1342 = vld [vmem:[#allocation2 + $0x18] sm:$0xff]
    %1347 = vrot.lane.b32.xlu0 %v1339, 32
    %v1348 = vpop.permute.xlu0 %1347
    %1349 = vrot.lane.b32.xlu0 %v1340, 32
    %v1350 = vpop.permute.xlu0 %1349
    %1351 = vrot.lane.b32.xlu0 %v1341, 32
    %v1352 = vpop.permute.xlu0 %1351
    %1353 = vrot.lane.b32.xlu0 %v1342, 32
    %v1354 = vpop.permute.xlu0 %1353
    %vm1359 = vcmask 261120
    %v1361 = vsel %vm1359, %v1331, 0
    %v1364 = vsel %vm1359, %v1332, 0
    %v1367 = vsel %vm1359, %v1333, 0
    %v1370 = vsel %vm1359, %v1334, 0
    %v1373 = vsel %vm1359, %v1335, 0
    %v1376 = vsel %vm1359, %v1336, 0
    %v1379 = vsel %vm1359, %v1337, 0
    %v1382 = vsel %vm1359, %v1338, 0
    %1384 = vmatprep.subr.mxu0 0.0
    %1385 = vmatpush1.msra.mxu0 %v1348
    %1386 = vmatprep.subr.mxu0 0.0
    %1387 = vmatpush1.msra.mxu0 %v1350
    %1388 = vmatprep.subr.mxu0 0.0
    %1389 = vmatpush1.msra.mxu0 %v1352
    %1390 = vmatprep.subr.mxu0 0.0
    %1391 = vmatpush1.msra.mxu0 %v1354
    %1392 = vmatprep.subr.mxu0 0.0
    %1393 = vmatpush1.msra.mxu0 0.0
    %1394 = vmatprep.subr.mxu0 0.0
    %1395 = vmatpush1.msra.mxu0 0.0
    %1396 = vmatprep.subr.mxu0 0.0
    %1397 = vmatpush1.msra.mxu0 0.0
    %1398 = vmatprep.subr.mxu0 0.0
    %1399 = vmatpush1.msra.mxu0 0.0
    %1400 = vmatprep.subr.mxu0 0.0
    %1401 = vmatpush1.msra.mxu0 0.0
    %1402 = vmatprep.subr.mxu0 0.0
    %1403 = vmatpush1.msra.mxu0 0.0
    %1404 = vmatprep.subr.mxu0 0.0
    %1405 = vmatpush1.msra.mxu0 0.0
    %1406 = vmatprep.subr.mxu0 0.0
    %1407 = vmatpush1.msra.mxu0 0.0
    %1408 = vmatprep.subr.mxu0 0.0
    %1409 = vmatpush1.msra.mxu0 0.0
    %1410 = vmatprep.subr.mxu0 0.0
    %1411 = vmatpush1.msra.mxu0 0.0
    %1412 = vmatprep.subr.mxu0 0.0
    %1413 = vmatpush1.msra.mxu0 0.0
    %1414 = vmatprep.subr.mxu0 0.0
    %1415 = vmatpush1.msra.mxu0 0.0
    %1416 = vmatprep.subr.mxu0 0.0
    %1417 = vmatpush1.msra.mxu0 0.0
    %1418 = vmatprep.subr.mxu0 0.0
    %1419 = vmatpush1.msra.mxu0 0.0
    %1420 = vmatprep.subr.mxu0 0.0
    %1421 = vmatpush1.msra.mxu0 0.0
    %1422 = vmatprep.subr.mxu0 0.0
    %1423 = vmatpush1.msra.mxu0 0.0
    %1424 = vmatprep.subr.mxu0 0.0
    %1425 = vmatpush1.msra.mxu0 0.0
    %1426 = vmatprep.subr.mxu0 0.0
    %1427 = vmatpush1.msra.mxu0 0.0
    %1428 = vmatprep.subr.mxu0 0.0
    %1429 = vmatpush1.msra.mxu0 0.0
    %1430 = vmatprep.subr.mxu0 0.0
    %1431 = vmatpush1.msra.mxu0 0.0
    %1432 = vmatprep.subr.mxu0 0.0
    %1433 = vmatpush1.msra.mxu0 0.0
    %1434 = vmatprep.subr.mxu0 0.0
    %1435 = vmatpush1.msra.mxu0 0.0
    %1436 = vmatprep.subr.mxu0 0.0
    %1437 = vmatpush1.msra.mxu0 0.0
    %1438 = vmatprep.subr.mxu0 0.0
    %1439 = vmatpush1.msra.mxu0 0.0
    %1440 = vmatprep.subr.mxu0 0.0
    %1441 = vmatpush1.msra.mxu0 0.0
    %1442 = vmatprep.subr.mxu0 0.0
    %1443 = vmatpush1.msra.mxu0 0.0
    %1444 = vmatprep.subr.mxu0 0.0
    %1445 = vmatpush1.msra.mxu0 0.0
    %1446 = vmatprep.subr.mxu0 0.0
    %1447 = vmatpush1.msra.mxu0 0.0
    %1448 = vmatprep.mubr.f32.mxu0 0.0
    %1449 = vmatmul.mubr.f32.gmra.mrb[0].mxu0 %v1361
    %v1450 = vpop.f32.mrb[0].mxu0
    %v1451 = vadd.f32 %v489, %v1450
    %v1452 = vpop.f32.mrb[0].mxu0
    %1453 = vmatprep.mubr.f32.mxu0 0.0
    %1454 = vmatmul.mubr.f32.gmra.mrb[0].mxu0 %v1364
    %v1455 = vpop.f32.mrb[0].mxu0
    %v1456 = vadd.f32 %v494, %v1455
    %v1457 = vpop.f32.mrb[0].mxu0
    %1458 = vmatprep.mubr.f32.mxu0 0.0
    %1459 = vmatmul.mubr.f32.gmra.mrb[0].mxu0 %v1367
    %v1460 = vpop.f32.mrb[0].mxu0
    %v1461 = vadd.f32 %v499, %v1460
    %v1462 = vpop.f32.mrb[0].mxu0
    %1463 = vmatprep.mubr.f32.mxu0 0.0
    %1464 = vmatmul.mubr.f32.gmra.mrb[0].mxu0 %v1370
    %v1465 = vpop.f32.mrb[0].mxu0
    %v1466 = vadd.f32 %v504, %v1465
    %v1467 = vpop.f32.mrb[0].mxu0
    %1468 = vmatprep.mubr.f32.mxu0 0.0
    %1469 = vmatmul.mubr.f32.gmra.mrb[0].mxu0 %v1373
    %v1470 = vpop.f32.mrb[0].mxu0
    %v1471 = vadd.f32 %v509, %v1470
    %v1472 = vpop.f32.mrb[0].mxu0
    %1473 = vmatprep.mubr.f32.mxu0 0.0
    %1474 = vmatmul.mubr.f32.gmra.mrb[0].mxu0 %v1376
    %v1475 = vpop.f32.mrb[0].mxu0
    %v1476 = vadd.f32 %v514, %v1475
    %v1477 = vpop.f32.mrb[0].mxu0
    %1478 = vmatprep.mubr.f32.mxu0 0.0
    %1479 = vmatmul.mubr.f32.gmra.mrb[0].mxu0 %v1379
    %v1480 = vpop.f32.mrb[0].mxu0
    %v1481 = vadd.f32 %v519, %v1480
    %v1482 = vpop.f32.mrb[0].mxu0
    %1483 = vmatprep.mubr.f32.mxu0 0.0
    %1484 = vmatmul.mubr.f32.gmra.mrb[0].mxu0 %v1382
    %v1485 = vpop.f32.mrb[0].mxu0
    %v1486 = vadd.f32 %v524, %v1485
    %v1487 = vpop.f32.mrb[0].mxu0
    %1488 = vdwg.mxu0
    %v1489 = vmul.f32 %v1451, 1.442695
    %v1490 = vpow.pop %v1489
    %v1491 = vmul.f32 %v1456, 1.442695
    %v1492 = vpow.pop %v1491
    %v1493 = vmul.f32 %v1461, 1.442695
    %v1494 = vpow.pop %v1493
    %v1495 = vmul.f32 %v1466, 1.442695
    %v1496 = vpow.pop %v1495
    %v1497 = vmul.f32 %v1471, 1.442695
    %v1498 = vpow.pop %v1497
    %v1499 = vmul.f32 %v1476, 1.442695
    %v1500 = vpow.pop %v1499
    %v1501 = vmul.f32 %v1481, 1.442695
    %v1502 = vpow.pop %v1501
    %v1503 = vmul.f32 %v1486, 1.442695
    %v1504 = vpow.pop %v1503
    %vm1505 = vcmask 15360
    %v1507 = vsel %vm1505, %v1490, 0
    %v1510 = vsel %vm1505, %v1492, 0
    %v1513 = vsel %vm1505, %v1494, 0
    %v1516 = vsel %vm1505, %v1496, 0
    %v1519 = vsel %vm1505, %v1498, 0
    %v1522 = vsel %vm1505, %v1500, 0
    %v1525 = vsel %vm1505, %v1502, 0
    %v1528 = vsel %vm1505, %v1504, 0
    %vm1530 = vcmask 1041408
    %v1531 = vsel %vm1530, %v108, 0
    %1533 = vmatprep.subr.mxu0 0.0
    %1534 = vmatpush1.msra.mxu0 %v1531
    %1535 = vmatprep.subr.mxu0 0.0
    %1536 = vmatpush1.msra.mxu0 0.0
    %1537 = vmatprep.subr.mxu0 0.0
    %1538 = vmatpush1.msra.mxu0 0.0
    %1539 = vmatprep.subr.mxu0 0.0
    %1540 = vmatpush1.msra.mxu0 0.0
    %1541 = vmatprep.subr.mxu0 0.0
    %1542 = vmatpush1.msra.mxu0 0.0
    %1543 = vmatprep.subr.mxu0 0.0
    %1544 = vmatpush1.msra.mxu0 0.0
    %1545 = vmatprep.subr.mxu0 0.0
    %1546 = vmatpush1.msra.mxu0 0.0
    %1547 = vmatprep.subr.mxu0 0.0
    %1548 = vmatpush1.msra.mxu0 0.0
    %1549 = vmatprep.subr.mxu0 0.0
    %1550 = vmatpush1.msra.mxu0 0.0
    %1551 = vmatprep.subr.mxu0 0.0
    %1552 = vmatpush1.msra.mxu0 0.0
    %1553 = vmatprep.subr.mxu0 0.0
    %1554 = vmatpush1.msra.mxu0 0.0
    %1555 = vmatprep.subr.mxu0 0.0
    %1556 = vmatpush1.msra.mxu0 0.0
    %1557 = vmatprep.subr.mxu0 0.0
    %1558 = vmatpush1.msra.mxu0 0.0
    %1559 = vmatprep.subr.mxu0 0.0
    %1560 = vmatpush1.msra.mxu0 0.0
    %1561 = vmatprep.subr.mxu0 0.0
    %1562 = vmatpush1.msra.mxu0 0.0
    %1563 = vmatprep.subr.mxu0 0.0
    %1564 = vmatpush1.msra.mxu0 0.0
    %1565 = vmatprep.subr.mxu0 0.0
    %1566 = vmatpush1.msra.mxu0 0.0
    %1567 = vmatprep.subr.mxu0 0.0
    %1568 = vmatpush1.msra.mxu0 0.0
    %1569 = vmatprep.subr.mxu0 0.0
    %1570 = vmatpush1.msra.mxu0 0.0
    %1571 = vmatprep.subr.mxu0 0.0
    %1572 = vmatpush1.msra.mxu0 0.0
    %1573 = vmatprep.subr.mxu0 0.0
    %1574 = vmatpush1.msra.mxu0 0.0
    %1575 = vmatprep.subr.mxu0 0.0
    %1576 = vmatpush1.msra.mxu0 0.0
    %1577 = vmatprep.subr.mxu0 0.0
    %1578 = vmatpush1.msra.mxu0 0.0
    %1579 = vmatprep.subr.mxu0 0.0
    %1580 = vmatpush1.msra.mxu0 0.0
    %1581 = vmatprep.subr.mxu0 0.0
    %1582 = vmatpush1.msra.mxu0 0.0
    %1583 = vmatprep.subr.mxu0 0.0
    %1584 = vmatpush1.msra.mxu0 0.0
    %1585 = vmatprep.subr.mxu0 0.0
    %1586 = vmatpush1.msra.mxu0 0.0
    %1587 = vmatprep.subr.mxu0 0.0
    %1588 = vmatpush1.msra.mxu0 0.0
    %1589 = vmatprep.subr.mxu0 0.0
    %1590 = vmatpush1.msra.mxu0 0.0
    %1591 = vmatprep.subr.mxu0 0.0
    %1592 = vmatpush1.msra.mxu0 0.0
    %1593 = vmatprep.subr.mxu0 0.0
    %1594 = vmatpush1.msra.mxu0 0.0
    %1595 = vmatprep.subr.mxu0 0.0
    %1596 = vmatpush1.msra.mxu0 0.0
    %1597 = vmatprep.mubr.f32.mxu0 0.0
    %1598 = vmatmul.mubr.f32.gmra.mrb[0].mxu0 %v1507
    %v1599 = vpop.f32.mrb[0].mxu0
    %v1600 = vadd.f32 0.0, %v1599
    %v1601 = vpop.f32.mrb[0].mxu0
    %1602 = vmatprep.mubr.f32.mxu0 0.0
    %1603 = vmatmul.mubr.f32.gmra.mrb[0].mxu0 %v1510
    %v1604 = vpop.f32.mrb[0].mxu0
    %v1605 = vadd.f32 0.0, %v1604
    %v1606 = vpop.f32.mrb[0].mxu0
    %1607 = vmatprep.mubr.f32.mxu0 0.0
    %1608 = vmatmul.mubr.f32.gmra.mrb[0].mxu0 %v1513
    %v1609 = vpop.f32.mrb[0].mxu0
    %v1610 = vadd.f32 0.0, %v1609
    %v1611 = vpop.f32.mrb[0].mxu0
    %1612 = vmatprep.mubr.f32.mxu0 0.0
    %1613 = vmatmul.mubr.f32.gmra.mrb[0].mxu0 %v1516
    %v1614 = vpop.f32.mrb[0].mxu0
    %v1615 = vadd.f32 0.0, %v1614
    %v1616 = vpop.f32.mrb[0].mxu0
    %1617 = vmatprep.mubr.f32.mxu0 0.0
    %1618 = vmatmul.mubr.f32.gmra.mrb[0].mxu0 %v1519
    %v1619 = vpop.f32.mrb[0].mxu0
    %v1620 = vadd.f32 0.0, %v1619
    %v1621 = vpop.f32.mrb[0].mxu0
    %1622 = vmatprep.mubr.f32.mxu0 0.0
    %1623 = vmatmul.mubr.f32.gmra.mrb[0].mxu0 %v1522
    %v1624 = vpop.f32.mrb[0].mxu0
    %v1625 = vadd.f32 0.0, %v1624
    %v1626 = vpop.f32.mrb[0].mxu0
    %1627 = vmatprep.mubr.f32.mxu0 0.0
    %1628 = vmatmul.mubr.f32.gmra.mrb[0].mxu0 %v1525
    %v1629 = vpop.f32.mrb[0].mxu0
    %v1630 = vadd.f32 0.0, %v1629
    %v1631 = vpop.f32.mrb[0].mxu0
    %1632 = vmatprep.mubr.f32.mxu0 0.0
    %1633 = vmatmul.mubr.f32.gmra.mrb[0].mxu0 %v1528
    %v1634 = vpop.f32.mrb[0].mxu0
    %v1635 = vadd.f32 0.0, %v1634
    %v1636 = vpop.f32.mrb[0].mxu0
    %1637 = vdwg.mxu0
    %v1638 = vmul.f32 %v1600, %v1168
    %v1639 = vmul.f32 %v1605, %v1173
    %v1640 = vmul.f32 %v1610, %v1178
    %v1641 = vmul.f32 %v1615, %v1183
    %v1642 = vmul.f32 %v1620, %v1188
    %v1643 = vmul.f32 %v1625, %v1193
    %v1644 = vmul.f32 %v1630, %v1198
    %v1645 = vmul.f32 %v1635, %v1203
    %1646 = vmatprep.subr.mxu0 0.0
    %1647 = vmatpush1.msra.mxu0 %v1638
    %1648 = vmatprep.subr.mxu0 0.0
    %1649 = vmatpush1.msra.mxu0 %v1639
    %1650 = vmatprep.subr.mxu0 0.0
    %1651 = vmatpush1.msra.mxu0 %v1640
    %1652 = vmatprep.subr.mxu0 0.0
    %1653 = vmatpush1.msra.mxu0 %v1641
    %1654 = vmatprep.subr.mxu0 0.0
    %1655 = vmatpush1.msra.mxu0 %v1642
    %1656 = vmatprep.subr.mxu0 0.0
    %1657 = vmatpush1.msra.mxu0 %v1643
    %1658 = vmatprep.subr.mxu0 0.0
    %1659 = vmatpush1.msra.mxu0 %v1644
    %1660 = vmatprep.subr.mxu0 0.0
    %1661 = vmatpush1.msra.mxu0 %v1645
    %1662 = vmatprep.subr.mxu0 0.0
    %1663 = vmatpush1.msra.mxu0 0.0
    %1664 = vmatprep.subr.mxu0 0.0
    %1665 = vmatpush1.msra.mxu0 0.0
    %1666 = vmatprep.subr.mxu0 0.0
    %1667 = vmatpush1.msra.mxu0 0.0
    %1668 = vmatprep.subr.mxu0 0.0
    %1669 = vmatpush1.msra.mxu0 0.0
    %1670 = vmatprep.subr.mxu0 0.0
    %1671 = vmatpush1.msra.mxu0 0.0
    %1672 = vmatprep.subr.mxu0 0.0
    %1673 = vmatpush1.msra.mxu0 0.0
    %1674 = vmatprep.subr.mxu0 0.0
    %1675 = vmatpush1.msra.mxu0 0.0
    %1676 = vmatprep.subr.mxu0 0.0
    %1677 = vmatpush1.msra.mxu0 0.0
    %1678 = vmatprep.subr.mxu0 0.0
    %1679 = vmatpush1.msra.mxu0 0.0
    %1680 = vmatprep.subr.mxu0 0.0
    %1681 = vmatpush1.msra.mxu0 0.0
    %1682 = vmatprep.subr.mxu0 0.0
    %1683 = vmatpush1.msra.mxu0 0.0
    %1684 = vmatprep.subr.mxu0 0.0
    %1685 = vmatpush1.msra.mxu0 0.0
    %1686 = vmatprep.subr.mxu0 0.0
    %1687 = vmatpush1.msra.mxu0 0.0
    %1688 = vmatprep.subr.mxu0 0.0
    %1689 = vmatpush1.msra.mxu0 0.0
    %1690 = vmatprep.subr.mxu0 0.0
    %1691 = vmatpush1.msra.mxu0 0.0
    %1692 = vmatprep.subr.mxu0 0.0
    %1693 = vmatpush1.msra.mxu0 0.0
    %1694 = vmatprep.subr.mxu0 0.0
    %1695 = vmatpush1.msra.mxu0 0.0
    %1696 = vmatprep.subr.mxu0 0.0
    %1697 = vmatpush1.msra.mxu0 0.0
    %1698 = vmatprep.subr.mxu0 0.0
    %1699 = vmatpush1.msra.mxu0 0.0
    %1700 = vmatprep.subr.mxu0 0.0
    %1701 = vmatpush1.msra.mxu0 0.0
    %1702 = vmatprep.subr.mxu0 0.0
    %1703 = vmatpush1.msra.mxu0 0.0
    %1704 = vmatprep.subr.mxu0 0.0
    %1705 = vmatpush1.msra.mxu0 0.0
    %1706 = vmatprep.subr.mxu0 0.0
    %1707 = vmatpush1.msra.mxu0 0.0
    %1708 = vmatprep.subr.mxu0 0.0
    %1709 = vmatpush1.msra.mxu0 0.0
    %1710 = vmatprep.mubr.f32.mxu0 0.0
    %1711 = vmatmul.mubr.f32.gmra.mrb[0].mxu0 %v799
    %v1712 = vpop.f32.mrb[0].mxu0
    %v1713 = vadd.f32 0.0, %v1712
    %v1714 = vpop.f32.mrb[0].mxu0
    %1715 = vdwg.mxu0
    %1716 = vmatprep.subr.mxu0 0.0
    %1717 = vmatpush1.msra.mxu0 %v1490
    %1718 = vmatprep.subr.mxu0 0.0
    %1719 = vmatpush1.msra.mxu0 %v1492
    %1720 = vmatprep.subr.mxu0 0.0
    %1721 = vmatpush1.msra.mxu0 %v1494
    %1722 = vmatprep.subr.mxu0 0.0
    %1723 = vmatpush1.msra.mxu0 %v1496
    %1724 = vmatprep.subr.mxu0 0.0
    %1725 = vmatpush1.msra.mxu0 %v1498
    %1726 = vmatprep.subr.mxu0 0.0
    %1727 = vmatpush1.msra.mxu0 %v1500
    %1728 = vmatprep.subr.mxu0 0.0
    %1729 = vmatpush1.msra.mxu0 %v1502
    %1730 = vmatprep.subr.mxu0 0.0
    %1731 = vmatpush1.msra.mxu0 %v1504
    %1732 = vmatprep.subr.mxu0 0.0
    %1733 = vmatpush1.msra.mxu0 0.0
    %1734 = vmatprep.subr.mxu0 0.0
    %1735 = vmatpush1.msra.mxu0 0.0
    %1736 = vmatprep.subr.mxu0 0.0
    %1737 = vmatpush1.msra.mxu0 0.0
    %1738 = vmatprep.subr.mxu0 0.0
    %1739 = vmatpush1.msra.mxu0 0.0
    %1740 = vmatprep.subr.mxu0 0.0
    %1741 = vmatpush1.msra.mxu0 0.0
    %1742 = vmatprep.subr.mxu0 0.0
    %1743 = vmatpush1.msra.mxu0 0.0
    %1744 = vmatprep.subr.mxu0 0.0
    %1745 = vmatpush1.msra.mxu0 0.0
    %1746 = vmatprep.subr.mxu0 0.0
    %1747 = vmatpush1.msra.mxu0 0.0
    %1748 = vmatprep.subr.mxu0 0.0
    %1749 = vmatpush1.msra.mxu0 0.0
    %1750 = vmatprep.subr.mxu0 0.0
    %1751 = vmatpush1.msra.mxu0 0.0
    %1752 = vmatprep.subr.mxu0 0.0
    %1753 = vmatpush1.msra.mxu0 0.0
    %1754 = vmatprep.subr.mxu0 0.0
    %1755 = vmatpush1.msra.mxu0 0.0
    %1756 = vmatprep.subr.mxu0 0.0
    %1757 = vmatpush1.msra.mxu0 0.0
    %1758 = vmatprep.subr.mxu0 0.0
    %1759 = vmatpush1.msra.mxu0 0.0
    %1760 = vmatprep.subr.mxu0 0.0
    %1761 = vmatpush1.msra.mxu0 0.0
    %1762 = vmatprep.subr.mxu0 0.0
    %1763 = vmatpush1.msra.mxu0 0.0
    %1764 = vmatprep.subr.mxu0 0.0
    %1765 = vmatpush1.msra.mxu0 0.0
    %1766 = vmatprep.subr.mxu0 0.0
    %1767 = vmatpush1.msra.mxu0 0.0
    %1768 = vmatprep.subr.mxu0 0.0
    %1769 = vmatpush1.msra.mxu0 0.0
    %1770 = vmatprep.subr.mxu0 0.0
    %1771 = vmatpush1.msra.mxu0 0.0
    %1772 = vmatprep.subr.mxu0 0.0
    %1773 = vmatpush1.msra.mxu0 0.0
    %1774 = vmatprep.subr.mxu0 0.0
    %1775 = vmatpush1.msra.mxu0 0.0
    %1776 = vmatprep.subr.mxu0 0.0
    %1777 = vmatpush1.msra.mxu0 0.0
    %1778 = vmatprep.subr.mxu0 0.0
    %1779 = vmatpush1.msra.mxu0 0.0
    %1780 = vmatprep.mubr.f32.mxu0 0.0
    %1781 = vmatmul.mubr.f32.gmra.mrb[0].mxu0 %v799
    %v1782 = vpop.f32.mrb[0].mxu0
    %v1783 = vadd.f32 0.0, %v1782
    %v1784 = vpop.f32.mrb[0].mxu0
    %1785 = vdwg.mxu0
    %v1786 = vrcp.pop %v1783
    %v1788 = vsel %vm1505, %v1786, 0
    %1790 = vmatprep.subr.mxu0 0.0
    %1791 = vmatpush1.msra.mxu0 %v1531
    %1792 = vmatprep.subr.mxu0 0.0
    %1793 = vmatpush1.msra.mxu0 0.0
    %1794 = vmatprep.subr.mxu0 0.0
    %1795 = vmatpush1.msra.mxu0 0.0
    %1796 = vmatprep.subr.mxu0 0.0
    %1797 = vmatpush1.msra.mxu0 0.0
    %1798 = vmatprep.subr.mxu0 0.0
    %1799 = vmatpush1.msra.mxu0 0.0
    %1800 = vmatprep.subr.mxu0 0.0
    %1801 = vmatpush1.msra.mxu0 0.0
    %1802 = vmatprep.subr.mxu0 0.0
    %1803 = vmatpush1.msra.mxu0 0.0
    %1804 = vmatprep.subr.mxu0 0.0
    %1805 = vmatpush1.msra.mxu0 0.0
    %1806 = vmatprep.subr.mxu0 0.0
    %1807 = vmatpush1.msra.mxu0 0.0
    %1808 = vmatprep.subr.mxu0 0.0
    %1809 = vmatpush1.msra.mxu0 0.0
    %1810 = vmatprep.subr.mxu0 0.0
    %1811 = vmatpush1.msra.mxu0 0.0
    %1812 = vmatprep.subr.mxu0 0.0
    %1813 = vmatpush1.msra.mxu0 0.0
    %1814 = vmatprep.subr.mxu0 0.0
    %1815 = vmatpush1.msra.mxu0 0.0
    %1816 = vmatprep.subr.mxu0 0.0
    %1817 = vmatpush1.msra.mxu0 0.0
    %1818 = vmatprep.subr.mxu0 0.0
    %1819 = vmatpush1.msra.mxu0 0.0
    %1820 = vmatprep.subr.mxu0 0.0
    %1821 = vmatpush1.msra.mxu0 0.0
    %1822 = vmatprep.subr.mxu0 0.0
    %1823 = vmatpush1.msra.mxu0 0.0
    %1824 = vmatprep.subr.mxu0 0.0
    %1825 = vmatpush1.msra.mxu0 0.0
    %1826 = vmatprep.subr.mxu0 0.0
    %1827 = vmatpush1.msra.mxu0 0.0
    %1828 = vmatprep.subr.mxu0 0.0
    %1829 = vmatpush1.msra.mxu0 0.0
    %1830 = vmatprep.subr.mxu0 0.0
    %1831 = vmatpush1.msra.mxu0 0.0
    %1832 = vmatprep.subr.mxu0 0.0
    %1833 = vmatpush1.msra.mxu0 0.0
    %1834 = vmatprep.subr.mxu0 0.0
    %1835 = vmatpush1.msra.mxu0 0.0
    %1836 = vmatprep.subr.mxu0 0.0
    %1837 = vmatpush1.msra.mxu0 0.0
    %1838 = vmatprep.subr.mxu0 0.0
    %1839 = vmatpush1.msra.mxu0 0.0
    %1840 = vmatprep.subr.mxu0 0.0
    %1841 = vmatpush1.msra.mxu0 0.0
    %1842 = vmatprep.subr.mxu0 0.0
    %1843 = vmatpush1.msra.mxu0 0.0
    %1844 = vmatprep.subr.mxu0 0.0
    %1845 = vmatpush1.msra.mxu0 0.0
    %1846 = vmatprep.subr.mxu0 0.0
    %1847 = vmatpush1.msra.mxu0 0.0
    %1848 = vmatprep.subr.mxu0 0.0
    %1849 = vmatpush1.msra.mxu0 0.0
    %1850 = vmatprep.subr.mxu0 0.0
    %1851 = vmatpush1.msra.mxu0 0.0
    %1852 = vmatprep.subr.mxu0 0.0
    %1853 = vmatpush1.msra.mxu0 0.0
    %1854 = vmatprep.mubr.f32.mxu0 0.0
    %1855 = vmatmul.mubr.f32.gmra.mrb[0].mxu0 %v1788
    %v1856 = vpop.f32.mrb[0].mxu0
    %v1857 = vadd.f32 0.0, %v1856
    %v1858 = vpop.f32.mrb[0].mxu0
    %1859 = vdwg.mxu0
    %v1860 = vmul.f32 %v1713, %v1857
    %v1861 = vld [vmem:[#allocation2 + $0x46] sm:$0x1]
    %v1862 = vlaneseq
    %v1863 = vshrl.u32 %v1862, 7
    %v1864 = vsub.s32 0, %v1863
    %v1865 = vrot.slane %v1861, %v1864
    %v1866 = vadd.f32 %v1860, %v1865
    %1867 = vrot.lane.b32.xlu0 %v1339, 64
    %v1868 = vpop.permute.xlu0 %1867
    %1869 = vrot.lane.b32.xlu0 %v1340, 64
    %v1870 = vpop.permute.xlu0 %1869
    %1871 = vrot.lane.b32.xlu0 %v1341, 64
    %v1872 = vpop.permute.xlu0 %1871
    %1873 = vrot.lane.b32.xlu0 %v1342, 64
    %v1874 = vpop.permute.xlu0 %1873
    %1880 = vrot.lane.b32.xlu0 %v1865, 96
    %v1881 = vpop.permute.xlu0 %1880
    %v1884 = vsel %vm1359, %v1866, 0
    %1886 = vmatprep.subr.mxu0 0.0
    %1887 = vmatpush1.msra.mxu0 %v1868
    %1888 = vmatprep.subr.mxu0 0.0
    %1889 = vmatpush1.msra.mxu0 %v1870
    %1890 = vmatprep.subr.mxu0 0.0
    %1891 = vmatpush1.msra.mxu0 %v1872
    %1892 = vmatprep.subr.mxu0 0.0
    %1893 = vmatpush1.msra.mxu0 %v1874
    %1894 = vmatprep.subr.mxu0 0.0
    %1895 = vmatpush1.msra.mxu0 0.0
    %1896 = vmatprep.subr.mxu0 0.0
    %1897 = vmatpush1.msra.mxu0 0.0
    %1898 = vmatprep.subr.mxu0 0.0
    %1899 = vmatpush1.msra.mxu0 0.0
    %1900 = vmatprep.subr.mxu0 0.0
    %1901 = vmatpush1.msra.mxu0 0.0
    %1902 = vmatprep.subr.mxu0 0.0
    %1903 = vmatpush1.msra.mxu0 0.0
    %1904 = vmatprep.subr.mxu0 0.0
    %1905 = vmatpush1.msra.mxu0 0.0
    %1906 = vmatprep.subr.mxu0 0.0
    %1907 = vmatpush1.msra.mxu0 0.0
    %1908 = vmatprep.subr.mxu0 0.0
    %1909 = vmatpush1.msra.mxu0 0.0
    %1910 = vmatprep.subr.mxu0 0.0
    %1911 = vmatpush1.msra.mxu0 0.0
    %1912 = vmatprep.subr.mxu0 0.0
    %1913 = vmatpush1.msra.mxu0 0.0
    %1914 = vmatprep.subr.mxu0 0.0
    %1915 = vmatpush1.msra.mxu0 0.0
    %1916 = vmatprep.subr.mxu0 0.0
    %1917 = vmatpush1.msra.mxu0 0.0
    %1918 = vmatprep.subr.mxu0 0.0
    %1919 = vmatpush1.msra.mxu0 0.0
    %1920 = vmatprep.subr.mxu0 0.0
    %1921 = vmatpush1.msra.mxu0 0.0
    %1922 = vmatprep.subr.mxu0 0.0
    %1923 = vmatpush1.msra.mxu0 0.0
    %1924 = vmatprep.subr.mxu0 0.0
    %1925 = vmatpush1.msra.mxu0 0.0
    %1926 = vmatprep.subr.mxu0 0.0
    %1927 = vmatpush1.msra.mxu0 0.0
    %1928 = vmatprep.subr.mxu0 0.0
    %1929 = vmatpush1.msra.mxu0 0.0
    %1930 = vmatprep.subr.mxu0 0.0
    %1931 = vmatpush1.msra.mxu0 0.0
    %1932 = vmatprep.subr.mxu0 0.0
    %1933 = vmatpush1.msra.mxu0 0.0
    %1934 = vmatprep.subr.mxu0 0.0
    %1935 = vmatpush1.msra.mxu0 0.0
    %1936 = vmatprep.subr.mxu0 0.0
    %1937 = vmatpush1.msra.mxu0 0.0
    %1938 = vmatprep.subr.mxu0 0.0
    %1939 = vmatpush1.msra.mxu0 0.0
    %1940 = vmatprep.subr.mxu0 0.0
    %1941 = vmatpush1.msra.mxu0 0.0
    %1942 = vmatprep.subr.mxu0 0.0
    %1943 = vmatpush1.msra.mxu0 0.0
    %1944 = vmatprep.subr.mxu0 0.0
    %1945 = vmatpush1.msra.mxu0 0.0
    %1946 = vmatprep.subr.mxu0 0.0
    %1947 = vmatpush1.msra.mxu0 0.0
    %1948 = vmatprep.subr.mxu0 0.0
    %1949 = vmatpush1.msra.mxu0 0.0
    %1950 = vmatprep.mubr.f32.mxu0 0.0
    %1951 = vmatmul.mubr.f32.gmra.mrb[0].mxu0 %v1884
    %v1952 = vpop.f32.mrb[0].mxu0
    %v1953 = vadd.f32 %v1881, %v1952
    %v1954 = vpop.f32.mrb[0].mxu0
    %1955 = vdwg.mxu0
    %1957 = vrot.lane.b32.xlu0 %v1953, 120
    %v1958 = vpop.permute.xlu0 %1957
    %v1959 = vsel %vm200, %v1953, 0
    %v1961 = vsel %vm200, %v1958, 0
    %1963 = vmatprep.subr.mxu0 0.0
    %1964 = vmatpush1.xpose.msra.mxu0 %v1961
    %1965 = vmatprep.subr.mxu0 0.0
    %1966 = vmatpush1.xpose.msra.mxu0 0.0
    %1967 = vmatprep.subr.mxu0 0.0
    %1968 = vmatpush1.xpose.msra.mxu0 0.0
    %1969 = vmatprep.subr.mxu0 0.0
    %1970 = vmatpush1.xpose.msra.mxu0 0.0
    %1971 = vmatprep.subr.mxu0 0.0
    %1972 = vmatpush1.xpose.msra.mxu0 0.0
    %1973 = vmatprep.subr.mxu0 0.0
    %1974 = vmatpush1.xpose.msra.mxu0 0.0
    %1975 = vmatprep.subr.mxu0 0.0
    %1976 = vmatpush1.xpose.msra.mxu0 0.0
    %1977 = vmatprep.subr.mxu0 0.0
    %1978 = vmatpush1.xpose.msra.mxu0 0.0
    %1979 = vmatprep.subr.mxu0 0.0
    %1980 = vmatpush1.xpose.msra.mxu0 0.0
    %1981 = vmatprep.subr.mxu0 0.0
    %1982 = vmatpush1.xpose.msra.mxu0 0.0
    %1983 = vmatprep.subr.mxu0 0.0
    %1984 = vmatpush1.xpose.msra.mxu0 0.0
    %1985 = vmatprep.subr.mxu0 0.0
    %1986 = vmatpush1.xpose.msra.mxu0 0.0
    %1987 = vmatprep.subr.mxu0 0.0
    %1988 = vmatpush1.xpose.msra.mxu0 0.0
    %1989 = vmatprep.subr.mxu0 0.0
    %1990 = vmatpush1.xpose.msra.mxu0 0.0
    %1991 = vmatprep.subr.mxu0 0.0
    %1992 = vmatpush1.xpose.msra.mxu0 0.0
    %1993 = vmatprep.subr.mxu0 0.0
    %1994 = vmatpush1.xpose.msra.mxu0 0.0
    %1995 = vmatprep.subr.mxu0 0.0
    %1996 = vmatpush1.xpose.msra.mxu0 0.0
    %1997 = vmatprep.subr.mxu0 0.0
    %1998 = vmatpush1.xpose.msra.mxu0 0.0
    %1999 = vmatprep.subr.mxu0 0.0
    %2000 = vmatpush1.xpose.msra.mxu0 0.0
    %2001 = vmatprep.subr.mxu0 0.0
    %2002 = vmatpush1.xpose.msra.mxu0 0.0
    %2003 = vmatprep.subr.mxu0 0.0
    %2004 = vmatpush1.xpose.msra.mxu0 0.0
    %2005 = vmatprep.subr.mxu0 0.0
    %2006 = vmatpush1.xpose.msra.mxu0 0.0
    %2007 = vmatprep.subr.mxu0 0.0
    %2008 = vmatpush1.xpose.msra.mxu0 0.0
    %2009 = vmatprep.subr.mxu0 0.0
    %2010 = vmatpush1.xpose.msra.mxu0 0.0
    %2011 = vmatprep.subr.mxu0 0.0
    %2012 = vmatpush1.xpose.msra.mxu0 0.0
    %2013 = vmatprep.subr.mxu0 0.0
    %2014 = vmatpush1.xpose.msra.mxu0 0.0
    %2015 = vmatprep.subr.mxu0 0.0
    %2016 = vmatpush1.xpose.msra.mxu0 0.0
    %2017 = vmatprep.subr.mxu0 0.0
    %2018 = vmatpush1.xpose.msra.mxu0 0.0
    %2019 = vmatprep.subr.mxu0 0.0
    %2020 = vmatpush1.xpose.msra.mxu0 0.0
    %2021 = vmatprep.subr.mxu0 0.0
    %2022 = vmatpush1.xpose.msra.mxu0 0.0
    %2023 = vmatprep.subr.mxu0 0.0
    %2024 = vmatpush1.xpose.msra.mxu0 0.0
    %2025 = vmatprep.subr.mxu0 0.0
    %2026 = vmatpush1.xpose.msra.mxu0 0.0
    %2027 = vmatprep.mubr.f32.mxu0 0.0
    %2028 = vmatmul.mubr.f32.gmra.mrb[0].mxu0 %v1959
    %v2029 = vpop.f32.mrb[0].mxu0
    %v2030 = vadd.f32 0.0, %v2029
    %v2031 = vpop.f32.mrb[0].mxu0
    %2032 = vdwg.mxu0
    %v2033 = vmul.f32 %v2030, 0.37796447
    %2034 = vrot.lane.b32.xlu0 %v113, 64
    %v2035 = vpop.permute.xlu0 %2034
    %v2037 = vadd.f32 %v2033, %v2035
    %v2038 = vmul.f32 %v2037, 1.442695
    %v2039 = vpow.pop %v2038
    %v2040 = vsel %vm200, %v2039, 0.0
    %2041 = vadd.xlane.f32.xlu0 %v2040
    %v2042 = vpop.xlane.xlu0 %2041
    %v2043 = vrcp.pop %v2042
    %2044 = vrot.lane.b32.xlu0 %v1953, 112
    %v2045 = vpop.permute.xlu0 %2044
    %v2048 = vsel %vm200, %v2039, 0
    %2050 = vmatprep.subr.mxu0 0.0
    %2051 = vmatpush1.msra.mxu0 %v2045
    %2052 = vmatprep.subr.mxu0 0.0
    %2053 = vmatpush1.msra.mxu0 0.0
    %2054 = vmatprep.subr.mxu0 0.0
    %2055 = vmatpush1.msra.mxu0 0.0
    %2056 = vmatprep.subr.mxu0 0.0
    %2057 = vmatpush1.msra.mxu0 0.0
    %2058 = vmatprep.subr.mxu0 0.0
    %2059 = vmatpush1.msra.mxu0 0.0
    %2060 = vmatprep.subr.mxu0 0.0
    %2061 = vmatpush1.msra.mxu0 0.0
    %2062 = vmatprep.subr.mxu0 0.0
    %2063 = vmatpush1.msra.mxu0 0.0
    %2064 = vmatprep.subr.mxu0 0.0
    %2065 = vmatpush1.msra.mxu0 0.0
    %2066 = vmatprep.subr.mxu0 0.0
    %2067 = vmatpush1.msra.mxu0 0.0
    %2068 = vmatprep.subr.mxu0 0.0
    %2069 = vmatpush1.msra.mxu0 0.0
    %2070 = vmatprep.subr.mxu0 0.0
    %2071 = vmatpush1.msra.mxu0 0.0
    %2072 = vmatprep.subr.mxu0 0.0
    %2073 = vmatpush1.msra.mxu0 0.0
    %2074 = vmatprep.subr.mxu0 0.0
    %2075 = vmatpush1.msra.mxu0 0.0
    %2076 = vmatprep.subr.mxu0 0.0
    %2077 = vmatpush1.msra.mxu0 0.0
    %2078 = vmatprep.subr.mxu0 0.0
    %2079 = vmatpush1.msra.mxu0 0.0
    %2080 = vmatprep.subr.mxu0 0.0
    %2081 = vmatpush1.msra.mxu0 0.0
    %2082 = vmatprep.subr.mxu0 0.0
    %2083 = vmatpush1.msra.mxu0 0.0
    %2084 = vmatprep.subr.mxu0 0.0
    %2085 = vmatpush1.msra.mxu0 0.0
    %2086 = vmatprep.subr.mxu0 0.0
    %2087 = vmatpush1.msra.mxu0 0.0
    %2088 = vmatprep.subr.mxu0 0.0
    %2089 = vmatpush1.msra.mxu0 0.0
    %2090 = vmatprep.subr.mxu0 0.0
    %2091 = vmatpush1.msra.mxu0 0.0
    %2092 = vmatprep.subr.mxu0 0.0
    %2093 = vmatpush1.msra.mxu0 0.0
    %2094 = vmatprep.subr.mxu0 0.0
    %2095 = vmatpush1.msra.mxu0 0.0
    %2096 = vmatprep.subr.mxu0 0.0
    %2097 = vmatpush1.msra.mxu0 0.0
    %2098 = vmatprep.subr.mxu0 0.0
    %2099 = vmatpush1.msra.mxu0 0.0
    %2100 = vmatprep.subr.mxu0 0.0
    %2101 = vmatpush1.msra.mxu0 0.0
    %2102 = vmatprep.subr.mxu0 0.0
    %2103 = vmatpush1.msra.mxu0 0.0
    %2104 = vmatprep.subr.mxu0 0.0
    %2105 = vmatpush1.msra.mxu0 0.0
    %2106 = vmatprep.subr.mxu0 0.0
    %2107 = vmatpush1.msra.mxu0 0.0
    %2108 = vmatprep.subr.mxu0 0.0
    %2109 = vmatpush1.msra.mxu0 0.0
    %2110 = vmatprep.subr.mxu0 0.0
    %2111 = vmatpush1.msra.mxu0 0.0
    %2112 = vmatprep.subr.mxu0 0.0
    %2113 = vmatpush1.msra.mxu0 0.0
    %2114 = vmatprep.mubr.f32.mxu0 0.0
    %2115 = vmatmul.mubr.f32.gmra.mrb[0].mxu0 %v2048
    %v2116 = vpop.f32.mrb[0].mxu0
    %v2117 = vadd.f32 0.0, %v2116
    %v2118 = vpop.f32.mrb[0].mxu0
    %2119 = vdwg.mxu0
    %v2120 = vmul.f32 %v2117, %v2043
    %2121 = vrot.lane.b32.xlu0 %v1953, 104
    %v2122 = vpop.permute.xlu0 %2121
    %v2124 = vadd.f32 %v2120, %v2122
    %2125 = vst.msk [vmem:[%s2] sm:$0xff] %vm200, %v2124
    // Predicated region
    $region14: #{attention_gnn.1} parent=1 // pred_check
      _
    $region15: #{attention_gnn.1} parent=1 // pred_check_branch
      %2127 = sbr.rel (0) target = $region17
    $region16: #{attention_gnn.1} parent=1 // pred_region
      _
    $region17: #{attention_gnn.1} parent=1 // pred_fallthru
      _
    // Predicated region
    $region18: #{attention_gnn.1} parent=1 // pred_check
      _
    $region19: #{attention_gnn.1} parent=1 // pred_check_branch
      %2129 = sbr.rel (0) target = $region21
    $region20: #{attention_gnn.1} parent=1 // pred_region
      _
    $region21: #{attention_gnn.1} parent=1 // pred_fallthru
      _
    %2130 = vsyncpa [#allocation3], 1

</llo_original>
